<compile_context>
chip_gen: v5e
topology: v5e:2x2
jax: 0.10.0
libtpu: 0.0.40
codegen_flags: <defaults>
</compile_context>

<pallas_src>
import functools
import statistics

import jax
import jax.numpy as jnp
from jax.experimental import pallas as pl
from jax.experimental.pallas import tpu as pltpu

# ----------------------------- configuration ------------------------------
IN_FEATURES = 32
OUT_FEATURES = 16
BATCH = 8
GRID_SIZE = 5
SPLINE_DEGREE = 3
SPLINE_ORDER = SPLINE_DEGREE + 1
ALPHA = 0.01
GRID_EPS = 1e-3
G = GRID_SIZE + 2 * SPLINE_ORDER        # 13 knots per feature
NS = GRID_SIZE + SPLINE_ORDER           # 9 spline bases after the recursion
NB = NS + 2                             # 11 total bases (spline + 2 relu tails)
BN_EPS = 1e-5


def _make_static_grid():
    """Knot / extended-grid values as plain Python floats (never traced)."""
    nd = statistics.NormalDist()  # Normal(0,1).icdf
    knot = [nd.inv_cdf(ALPHA / 2 + i * (1.0 - ALPHA) / (GRID_SIZE + 1))
            for i in range(GRID_SIZE + 2)]
    lin = [GRID_EPS * SPLINE_ORDER * i / (SPLINE_ORDER - 1)
           for i in range(SPLINE_ORDER)]
    grid = ([knot[0] - d for d in reversed(lin)] + knot[1:-1]
            + [knot[-1] + d for d in lin])                       # G = 13 values
    return tuple(float(v) for v in grid), float(knot[0]), float(knot[-1])


STATIC_GRID, KNOT0, KNOT_LAST = _make_static_grid()


def _round_up(a, m):
    return ((a + m - 1) // m) * m


# ------------------------------- kernel -----------------------------------
def dkan_kernel(x_ref, mean_ref, inv_std_ref, w_ref, bias_ref, out_ref,
                *, grid, knot0, knot_last, spline_degree):
    # Lane-dense layout: batch in lanes.  x tile is (F, TB) f32.
    x = x_ref[...]

    # ---- residual-branch activation: SiLU, sigmoid via tanh (EUP, no divide)
    silu = x * (0.5 * jnp.tanh(0.5 * x) + 0.5)

    # ---- BatchNorm1d (training mode).  Stats are precomputed over the FULL
    # batch in the wrapper so batch tiling keeps exact semantics.
    xn = (x - mean_ref[...]) * inv_std_ref[...]          # (F,1) lane-broadcast

    # ---- degree-0 indicators from SHARED comparisons:
    # c_i = (xn >= g_i);   [g_i, g_{i+1}) indicator = c_i - c_{i+1}
    c = [(xn >= g).astype(jnp.float32) for g in grid]            # 13 cmp+cvt
    bases = [c[i] - c[i + 1] for i in range(len(grid) - 1)]      # 12 subs

    # ---- Cox-de-Boor recursion, shared-t form:
    #   t_i = (xn - g_i) / (g_{i+k} - g_i)   (constants folded at trace time)
    #   new_i = t_i * bases[i] + (1 - t_{i+1}) * bases[i+1]
    for k in range(1, spline_degree + 1):
        n_t = len(bases)                                         # 13 - k
        t = []
        for i in range(n_t):
            inv = 1.0 / (grid[i + k] - grid[i])
            t.append(xn * inv + (-grid[i] * inv))
        u = [1.0 - ti for ti in t]                               # u[0] is DCE'd
        bases = [t[i] * bases[i] + u[i + 1] * bases[i + 1]
                 for i in range(n_t - 1)]                        # ends at NS

    # ---- relu tails appended as the last two basis functions
    out1 = jnp.maximum(knot0 - xn, 0.0)
    out2 = jnp.maximum(xn - knot_last, 0.0)

    # ---- sublane-aligned packing (12 blocks of 32 rows each -> (384, TB)),
    # then one fused MXU contraction  out^T = W_packed(OUT,K) @ feats(K,TB).
    feats = jnp.concatenate([silu] + bases + [out1, out2], axis=0)
    out_ref[...] = (jnp.dot(w_ref[...], feats,
                            preferred_element_type=jnp.float32)
                    + bias_ref[...])


# ------------------------------- wrapper -----------------------------------
def dkan_forward(x, w_res, b_res, w_sp, b_sp, *, tile_b=1024):
    B, F = x.shape
    OUT = w_res.shape[0]
    K = (NB + 1) * F

    # Full-batch BatchNorm statistics (biased variance, training mode) computed
    # outside the kernel so batch tiling / padding does not change semantics.
    mean = jnp.mean(x, axis=0)                                    # (F,)
    var = jnp.mean(jnp.square(x - mean), axis=0)                  # biased var
    inv_std = jax.lax.rsqrt(var + BN_EPS)
    mean_c = mean.reshape(F, 1).astype(jnp.float32)
    inv_std_c = inv_std.reshape(F, 1).astype(jnp.float32)
    # TODO(synk): BatchNorm running-stat (momentum) buffer updates are a
    # training-time side effect that does not affect this forward output.

    # Tile width: multiple of 256 lanes (MXU-aligned N dim, unmasked stores);
    # aim for >= 2 tiles when the batch allows it (v7x dual-TC sharding).
    tb = min(tile_b, max(256, _round_up((B + 1) // 2, 256)))
    b_pad = _round_up(B, tb)
    n_tiles = b_pad // tb
    xt = jnp.pad(x.T.astype(jnp.float32), ((0, 0), (0, b_pad - B)))  # (F, Bp)

    # Host-side weight packing for out^T = W_packed @ feats.
    # feats rows: [0:F) = silu(x) (residual); [F+n*F : F+(n+1)*F) = basis n.
    # PyTorch bspline column index is f*NB + n  ->  reorder to n*F + f.
    w_sp_t = jnp.transpose(w_sp.reshape(OUT, F, NB),
                           (0, 2, 1)).reshape(OUT, NB * F)
    w_packed = jnp.concatenate([w_res, w_sp_t], axis=1)           # (OUT, K)
    bias = (b_res + b_sp).reshape(OUT, 1)                         # fused biases

    kernel = functools.partial(dkan_kernel, grid=STATIC_GRID, knot0=KNOT0,
                               knot_last=KNOT_LAST,
                               spline_degree=SPLINE_DEGREE)

    out_t = pl.pallas_call(
        kernel,
        out_shape=jax.ShapeDtypeStruct((OUT, b_pad), jnp.float32),
        grid=(n_tiles,),
        in_specs=[
            pl.BlockSpec((F, tb), lambda i: (0, i)),              # x^T tile
            pl.BlockSpec((F, 1), lambda i: (0, 0)),               # BN mean
            pl.BlockSpec((F, 1), lambda i: (0, 0)),               # BN 1/std
            pl.BlockSpec((OUT, K), lambda i: (0, 0)),             # packed W
            pl.BlockSpec((OUT, 1), lambda i: (0, 0)),             # fused bias
        ],
        out_specs=pl.BlockSpec((OUT, tb), lambda i: (0, i)),
        compiler_params=pltpu.CompilerParams(
            dimension_semantics=("parallel",)),
    )(xt, mean_c, inv_std_c, w_packed, bias)

    return out_t[:, :B].T                                          # (B, OUT)


# ---------------------- deterministic parameter setup ----------------------
def make_params():
    key = jax.random.PRNGKey(0)
    k1, k2, k3, k4 = jax.random.split(key, 4)
    bound_res = 1.0 / float(IN_FEATURES) ** 0.5
    bound_sp = 1.0 / float(IN_FEATURES * NB) ** 0.5
    w_res = jax.random.uniform(k1, (OUT_FEATURES, IN_FEATURES),
                               minval=-bound_res, maxval=bound_res,
                               dtype=jnp.float32)
    b_res = jax.random.uniform(k2, (OUT_FEATURES,),
                               minval=-bound_res, maxval=bound_res,
                               dtype=jnp.float32)
    w_sp = jax.random.uniform(k3, (OUT_FEATURES, IN_FEATURES * NB),
                              minval=-bound_sp, maxval=bound_sp,
                              dtype=jnp.float32)
    b_sp = jax.random.uniform(k4, (OUT_FEATURES,),
                              minval=-bound_sp, maxval=bound_sp,
                              dtype=jnp.float32)
    return w_res, b_res, w_sp, b_sp


if __name__ == "__main__":
    w_res, b_res, w_sp, b_sp = make_params()
    x = jax.random.normal(jax.random.PRNGKey(0), (BATCH, IN_FEATURES),
                          dtype=jnp.float32)
    out = dkan_forward(x, w_res, b_res, w_sp, b_sp)
    jax.block_until_ready(out)
    assert out.shape == (BATCH, OUT_FEATURES)
    print("KERNEL_OK")
</pallas_src>

<mosaic_0001>
module attributes {stable_mosaic.version = 11 : i64} {
  func.func @dkan_kernel(%arg0: i32, %arg1: memref<32x256xf32, #tpu.memory_space<vmem>>, %arg2: memref<32x1xf32, #tpu.memory_space<vmem>>, %arg3: memref<32x1xf32, #tpu.memory_space<vmem>>, %arg4: memref<16x384xf32, #tpu.memory_space<vmem>>, %arg5: memref<16x1xf32, #tpu.memory_space<vmem>>, %arg6: memref<16x256xf32, #tpu.memory_space<vmem>>) attributes {dimension_semantics = [#tpu.dimension_semantics<parallel>], iteration_bounds = array<i64: 1>, scalar_prefetch = 0 : i64, scratch_operands = 0 : i64, tpu.core_type = #tpu.core_type<tc>, window_params = [{transform_indices = @transform_0, window_bounds = array<i64: 32, 256>}, {pipeline_mode = #tpu.pipeline_mode<synchronous>, transform_indices = @transform_1, window_bounds = array<i64: 32, 1>}, {pipeline_mode = #tpu.pipeline_mode<synchronous>, transform_indices = @transform_2, window_bounds = array<i64: 32, 1>}, {pipeline_mode = #tpu.pipeline_mode<synchronous>, transform_indices = @transform_3, window_bounds = array<i64: 16, 384>}, {pipeline_mode = #tpu.pipeline_mode<synchronous>, transform_indices = @transform_4, window_bounds = array<i64: 16, 1>}, {transform_indices = @transform_5, window_bounds = array<i64: 16, 256>}]} {
    %c0 = arith.constant 0 : index
    %c0_0 = arith.constant 0 : index
    %0 = vector.load %arg1[%c0, %c0_0] : memref<32x256xf32, #tpu.memory_space<vmem>>, vector<32x256xf32>
    %cst = arith.constant 5.000000e-01 : f32
    %1 = vector.broadcast %cst : f32 to vector<32x256xf32>
    %2 = arith.mulf %1, %0 : vector<32x256xf32>
    %3 = math.tanh %2 : vector<32x256xf32>
    %cst_1 = arith.constant 5.000000e-01 : f32
    %4 = vector.broadcast %cst_1 : f32 to vector<32x256xf32>
    %5 = arith.mulf %4, %3 : vector<32x256xf32>
    %cst_2 = arith.constant 5.000000e-01 : f32
    %6 = vector.broadcast %cst_2 : f32 to vector<32x256xf32>
    %7 = arith.addf %5, %6 : vector<32x256xf32>
    %8 = arith.mulf %0, %7 : vector<32x256xf32>
    %c0_3 = arith.constant 0 : index
    %c0_4 = arith.constant 0 : index
    %9 = vector.load %arg2[%c0_3, %c0_4] : memref<32x1xf32, #tpu.memory_space<vmem>>, vector<32x1xf32>
    %10 = vector.broadcast %9 : vector<32x1xf32> to vector<32x256xf32>
    %11 = arith.subf %0, %10 : vector<32x256xf32>
    %c0_5 = arith.constant 0 : index
    %c0_6 = arith.constant 0 : index
    %12 = vector.load %arg3[%c0_5, %c0_6] : memref<32x1xf32, #tpu.memory_space<vmem>>, vector<32x1xf32>
    %13 = vector.broadcast %12 : vector<32x1xf32> to vector<32x256xf32>
    %14 = arith.mulf %11, %13 : vector<32x256xf32>
    %cst_7 = arith.constant -2.57982922 : f32
    %15 = vector.broadcast %cst_7 : f32 to vector<32x256xf32>
    %16 = arith.cmpf oge, %14, %15 : vector<32x256xf32>
    %17 = arith.extui %16 : vector<32x256xi1> to vector<32x256xi32>
    %18 = arith.sitofp %17 : vector<32x256xi32> to vector<32x256xf32>
    %cst_8 = arith.constant -2.57849598 : f32
    %19 = vector.broadcast %cst_8 : f32 to vector<32x256xf32>
    %20 = arith.cmpf oge, %14, %19 : vector<32x256xf32>
    %21 = arith.extui %20 : vector<32x256xi1> to vector<32x256xi32>
    %22 = arith.sitofp %21 : vector<32x256xi32> to vector<32x256xf32>
    %cst_9 = arith.constant -2.57716274 : f32
    %23 = vector.broadcast %cst_9 : f32 to vector<32x256xf32>
    %24 = arith.cmpf oge, %14, %23 : vector<32x256xf32>
    %25 = arith.extui %24 : vector<32x256xi1> to vector<32x256xi32>
    %26 = arith.sitofp %25 : vector<32x256xi32> to vector<32x256xf32>
    %cst_10 = arith.constant -2.57582927 : f32
    %27 = vector.broadcast %cst_10 : f32 to vector<32x256xf32>
    %28 = arith.cmpf oge, %14, %27 : vector<32x256xf32>
    %29 = arith.extui %28 : vector<32x256xi1> to vector<32x256xi32>
    %30 = arith.sitofp %29 : vector<32x256xi32> to vector<32x256xf32>
    %cst_11 = arith.constant -0.954165279 : f32
    %31 = vector.broadcast %cst_11 : f32 to vector<32x256xf32>
    %32 = arith.cmpf oge, %14, %31 : vector<32x256xf32>
    %33 = arith.extui %32 : vector<32x256xi1> to vector<32x256xi32>
    %34 = arith.sitofp %33 : vector<32x256xi32> to vector<32x256xf32>
    %cst_12 = arith.constant -4.261480e-01 : f32
    %35 = vector.broadcast %cst_12 : f32 to vector<32x256xf32>
    %36 = arith.cmpf oge, %14, %35 : vector<32x256xf32>
    %37 = arith.extui %36 : vector<32x256xi1> to vector<32x256xi32>
    %38 = arith.sitofp %37 : vector<32x256xi32> to vector<32x256xf32>
    %cst_13 = arith.constant -1.39145821E-16 : f32
    %39 = vector.broadcast %cst_13 : f32 to vector<32x256xf32>
    %40 = arith.cmpf oge, %14, %39 : vector<32x256xf32>
    %41 = arith.extui %40 : vector<32x256xi1> to vector<32x256xi32>
    %42 = arith.sitofp %41 : vector<32x256xi32> to vector<32x256xf32>
    %cst_14 = arith.constant 4.261480e-01 : f32
    %43 = vector.broadcast %cst_14 : f32 to vector<32x256xf32>
    %44 = arith.cmpf oge, %14, %43 : vector<32x256xf32>
    %45 = arith.extui %44 : vector<32x256xi1> to vector<32x256xi32>
    %46 = arith.sitofp %45 : vector<32x256xi32> to vector<32x256xf32>
    %cst_15 = arith.constant 0.954165279 : f32
    %47 = vector.broadcast %cst_15 : f32 to vector<32x256xf32>
    %48 = arith.cmpf oge, %14, %47 : vector<32x256xf32>
    %49 = arith.extui %48 : vector<32x256xi1> to vector<32x256xi32>
    %50 = arith.sitofp %49 : vector<32x256xi32> to vector<32x256xf32>
    %cst_16 = arith.constant 2.57582927 : f32
    %51 = vector.broadcast %cst_16 : f32 to vector<32x256xf32>
    %52 = arith.cmpf oge, %14, %51 : vector<32x256xf32>
    %53 = arith.extui %52 : vector<32x256xi1> to vector<32x256xi32>
    %54 = arith.sitofp %53 : vector<32x256xi32> to vector<32x256xf32>
    %cst_17 = arith.constant 2.57716274 : f32
    %55 = vector.broadcast %cst_17 : f32 to vector<32x256xf32>
    %56 = arith.cmpf oge, %14, %55 : vector<32x256xf32>
    %57 = arith.extui %56 : vector<32x256xi1> to vector<32x256xi32>
    %58 = arith.sitofp %57 : vector<32x256xi32> to vector<32x256xf32>
    %cst_18 = arith.constant 2.57849598 : f32
    %59 = vector.broadcast %cst_18 : f32 to vector<32x256xf32>
    %60 = arith.cmpf oge, %14, %59 : vector<32x256xf32>
    %61 = arith.extui %60 : vector<32x256xi1> to vector<32x256xi32>
    %62 = arith.sitofp %61 : vector<32x256xi32> to vector<32x256xf32>
    %cst_19 = arith.constant 2.57982922 : f32
    %63 = vector.broadcast %cst_19 : f32 to vector<32x256xf32>
    %64 = arith.cmpf oge, %14, %63 : vector<32x256xf32>
    %65 = arith.extui %64 : vector<32x256xi1> to vector<32x256xi32>
    %66 = arith.sitofp %65 : vector<32x256xi32> to vector<32x256xf32>
    %67 = arith.subf %18, %22 : vector<32x256xf32>
    %68 = arith.subf %22, %26 : vector<32x256xf32>
    %69 = arith.subf %26, %30 : vector<32x256xf32>
    %70 = arith.subf %30, %34 : vector<32x256xf32>
    %71 = arith.subf %34, %38 : vector<32x256xf32>
    %72 = arith.subf %38, %42 : vector<32x256xf32>
    %73 = arith.subf %42, %46 : vector<32x256xf32>
    %74 = arith.subf %46, %50 : vector<32x256xf32>
    %75 = arith.subf %50, %54 : vector<32x256xf32>
    %76 = arith.subf %54, %58 : vector<32x256xf32>
    %77 = arith.subf %58, %62 : vector<32x256xf32>
    %78 = arith.subf %62, %66 : vector<32x256xf32>
    %cst_20 = arith.constant 7.500000e+02 : f32
    %79 = vector.broadcast %cst_20 : f32 to vector<32x256xf32>
    %80 = arith.mulf %14, %79 : vector<32x256xf32>
    %cst_21 = arith.constant 1934.87195 : f32
    %81 = vector.broadcast %cst_21 : f32 to vector<32x256xf32>
    %82 = arith.addf %80, %81 : vector<32x256xf32>
    %cst_22 = arith.constant 7.500000e+02 : f32
    %83 = vector.broadcast %cst_22 : f32 to vector<32x256xf32>
    %84 = arith.mulf %14, %83 : vector<32x256xf32>
    %cst_23 = arith.constant 1933.87195 : f32
    %85 = vector.broadcast %cst_23 : f32 to vector<32x256xf32>
    %86 = arith.addf %84, %85 : vector<32x256xf32>
    %cst_24 = arith.constant 7.500000e+02 : f32
    %87 = vector.broadcast %cst_24 : f32 to vector<32x256xf32>
    %88 = arith.mulf %14, %87 : vector<32x256xf32>
    %cst_25 = arith.constant 1932.87195 : f32
    %89 = vector.broadcast %cst_25 : f32 to vector<32x256xf32>
    %90 = arith.addf %88, %89 : vector<32x256xf32>
    %cst_26 = arith.constant 0.616650521 : f32
    %91 = vector.broadcast %cst_26 : f32 to vector<32x256xf32>
    %92 = arith.mulf %14, %91 : vector<32x256xf32>
    %cst_27 = arith.constant 1.58838654 : f32
    %93 = vector.broadcast %cst_27 : f32 to vector<32x256xf32>
    %94 = arith.addf %92, %93 : vector<32x256xf32>
    %cst_28 = arith.constant 1.89387751 : f32
    %95 = vector.broadcast %cst_28 : f32 to vector<32x256xf32>
    %96 = arith.mulf %14, %95 : vector<32x256xf32>
    %cst_29 = arith.constant 1.80707216 : f32
    %97 = vector.broadcast %cst_29 : f32 to vector<32x256xf32>
    %98 = arith.addf %96, %97 : vector<32x256xf32>
    %cst_30 = arith.constant 2.34660244 : f32
    %99 = vector.broadcast %cst_30 : f32 to vector<32x256xf32>
    %100 = arith.mulf %14, %99 : vector<32x256xf32>
    %cst_31 = arith.constant 1.000000e+00 : f32
    %101 = vector.broadcast %cst_31 : f32 to vector<32x256xf32>
    %102 = arith.addf %100, %101 : vector<32x256xf32>
    %cst_32 = arith.constant 2.34660244 : f32
    %103 = vector.broadcast %cst_32 : f32 to vector<32x256xf32>
    %104 = arith.mulf %14, %103 : vector<32x256xf32>
    %cst_33 = arith.constant 3.26519952E-16 : f32
    %105 = vector.broadcast %cst_33 : f32 to vector<32x256xf32>
    %106 = arith.addf %104, %105 : vector<32x256xf32>
    %cst_34 = arith.constant 1.89387751 : f32
    %107 = vector.broadcast %cst_34 : f32 to vector<32x256xf32>
    %108 = arith.mulf %14, %107 : vector<32x256xf32>
    %cst_35 = arith.constant -0.807072162 : f32
    %109 = vector.broadcast %cst_35 : f32 to vector<32x256xf32>
    %110 = arith.addf %108, %109 : vector<32x256xf32>
    %cst_36 = arith.constant 0.616650521 : f32
    %111 = vector.broadcast %cst_36 : f32 to vector<32x256xf32>
    %112 = arith.mulf %14, %111 : vector<32x256xf32>
    %cst_37 = arith.constant -0.588386536 : f32
    %113 = vector.broadcast %cst_37 : f32 to vector<32x256xf32>
    %114 = arith.addf %112, %113 : vector<32x256xf32>
    %cst_38 = arith.constant 7.500000e+02 : f32
    %115 = vector.broadcast %cst_38 : f32 to vector<32x256xf32>
    %116 = arith.mulf %14, %115 : vector<32x256xf32>
    %cst_39 = arith.constant -1931.87195 : f32
    %117 = vector.broadcast %cst_39 : f32 to vector<32x256xf32>
    %118 = arith.addf %116, %117 : vector<32x256xf32>
    %cst_40 = arith.constant 7.500000e+02 : f32
    %119 = vector.broadcast %cst_40 : f32 to vector<32x256xf32>
    %120 = arith.mulf %14, %119 : vector<32x256xf32>
    %cst_41 = arith.constant -1932.87195 : f32
    %121 = vector.broadcast %cst_41 : f32 to vector<32x256xf32>
    %122 = arith.addf %120, %121 : vector<32x256xf32>
    %cst_42 = arith.constant 7.500000e+02 : f32
    %123 = vector.broadcast %cst_42 : f32 to vector<32x256xf32>
    %124 = arith.mulf %14, %123 : vector<32x256xf32>
    %cst_43 = arith.constant -1933.87195 : f32
    %125 = vector.broadcast %cst_43 : f32 to vector<32x256xf32>
    %126 = arith.addf %124, %125 : vector<32x256xf32>
    %cst_44 = arith.constant 1.000000e+00 : f32
    %127 = vector.broadcast %cst_44 : f32 to vector<32x256xf32>
    %128 = arith.subf %127, %86 : vector<32x256xf32>
    %cst_45 = arith.constant 1.000000e+00 : f32
    %129 = vector.broadcast %cst_45 : f32 to vector<32x256xf32>
    %130 = arith.subf %129, %90 : vector<32x256xf32>
    %cst_46 = arith.constant 1.000000e+00 : f32
    %131 = vector.broadcast %cst_46 : f32 to vector<32x256xf32>
    %132 = arith.subf %131, %94 : vector<32x256xf32>
    %cst_47 = arith.constant 1.000000e+00 : f32
    %133 = vector.broadcast %cst_47 : f32 to vector<32x256xf32>
    %134 = arith.subf %133, %98 : vector<32x256xf32>
    %cst_48 = arith.constant 1.000000e+00 : f32
    %135 = vector.broadcast %cst_48 : f32 to vector<32x256xf32>
    %136 = arith.subf %135, %102 : vector<32x256xf32>
    %cst_49 = arith.constant 1.000000e+00 : f32
    %137 = vector.broadcast %cst_49 : f32 to vector<32x256xf32>
    %138 = arith.subf %137, %106 : vector<32x256xf32>
    %cst_50 = arith.constant 1.000000e+00 : f32
    %139 = vector.broadcast %cst_50 : f32 to vector<32x256xf32>
    %140 = arith.subf %139, %110 : vector<32x256xf32>
    %cst_51 = arith.constant 1.000000e+00 : f32
    %141 = vector.broadcast %cst_51 : f32 to vector<32x256xf32>
    %142 = arith.subf %141, %114 : vector<32x256xf32>
    %cst_52 = arith.constant 1.000000e+00 : f32
    %143 = vector.broadcast %cst_52 : f32 to vector<32x256xf32>
    %144 = arith.subf %143, %118 : vector<32x256xf32>
    %cst_53 = arith.constant 1.000000e+00 : f32
    %145 = vector.broadcast %cst_53 : f32 to vector<32x256xf32>
    %146 = arith.subf %145, %122 : vector<32x256xf32>
    %cst_54 = arith.constant 1.000000e+00 : f32
    %147 = vector.broadcast %cst_54 : f32 to vector<32x256xf32>
    %148 = arith.subf %147, %126 : vector<32x256xf32>
    %149 = arith.mulf %82, %67 : vector<32x256xf32>
    %150 = arith.mulf %128, %68 : vector<32x256xf32>
    %151 = arith.addf %149, %150 : vector<32x256xf32>
    %152 = arith.mulf %86, %68 : vector<32x256xf32>
    %153 = arith.mulf %130, %69 : vector<32x256xf32>
    %154 = arith.addf %152, %153 : vector<32x256xf32>
    %155 = arith.mulf %90, %69 : vector<32x256xf32>
    %156 = arith.mulf %132, %70 : vector<32x256xf32>
    %157 = arith.addf %155, %156 : vector<32x256xf32>
    %158 = arith.mulf %94, %70 : vector<32x256xf32>
    %159 = arith.mulf %134, %71 : vector<32x256xf32>
    %160 = arith.addf %158, %159 : vector<32x256xf32>
    %161 = arith.mulf %98, %71 : vector<32x256xf32>
    %162 = arith.mulf %136, %72 : vector<32x256xf32>
    %163 = arith.addf %161, %162 : vector<32x256xf32>
    %164 = arith.mulf %102, %72 : vector<32x256xf32>
    %165 = arith.mulf %138, %73 : vector<32x256xf32>
    %166 = arith.addf %164, %165 : vector<32x256xf32>
    %167 = arith.mulf %106, %73 : vector<32x256xf32>
    %168 = arith.mulf %140, %74 : vector<32x256xf32>
    %169 = arith.addf %167, %168 : vector<32x256xf32>
    %170 = arith.mulf %110, %74 : vector<32x256xf32>
    %171 = arith.mulf %142, %75 : vector<32x256xf32>
    %172 = arith.addf %170, %171 : vector<32x256xf32>
    %173 = arith.mulf %114, %75 : vector<32x256xf32>
    %174 = arith.mulf %144, %76 : vector<32x256xf32>
    %175 = arith.addf %173, %174 : vector<32x256xf32>
    %176 = arith.mulf %118, %76 : vector<32x256xf32>
    %177 = arith.mulf %146, %77 : vector<32x256xf32>
    %178 = arith.addf %176, %177 : vector<32x256xf32>
    %179 = arith.mulf %122, %77 : vector<32x256xf32>
    %180 = arith.mulf %148, %78 : vector<32x256xf32>
    %181 = arith.addf %179, %180 : vector<32x256xf32>
    %cst_55 = arith.constant 3.750000e+02 : f32
    %182 = vector.broadcast %cst_55 : f32 to vector<32x256xf32>
    %183 = arith.mulf %14, %182 : vector<32x256xf32>
    %cst_56 = arith.constant 967.435974 : f32
    %184 = vector.broadcast %cst_56 : f32 to vector<32x256xf32>
    %185 = arith.addf %183, %184 : vector<32x256xf32>
    %cst_57 = arith.constant 3.750000e+02 : f32
    %186 = vector.broadcast %cst_57 : f32 to vector<32x256xf32>
    %187 = arith.mulf %14, %186 : vector<32x256xf32>
    %cst_58 = arith.constant 966.935974 : f32
    %188 = vector.broadcast %cst_58 : f32 to vector<32x256xf32>
    %189 = arith.addf %187, %188 : vector<32x256xf32>
    %cst_59 = arith.constant 0.616143942 : f32
    %190 = vector.broadcast %cst_59 : f32 to vector<32x256xf32>
    %191 = arith.mulf %14, %190 : vector<32x256xf32>
    %cst_60 = arith.constant 1.58790314 : f32
    %192 = vector.broadcast %cst_60 : f32 to vector<32x256xf32>
    %193 = arith.addf %191, %192 : vector<32x256xf32>
    %cst_61 = arith.constant 0.465185225 : f32
    %194 = vector.broadcast %cst_61 : f32 to vector<32x256xf32>
    %195 = arith.mulf %14, %194 : vector<32x256xf32>
    %cst_62 = arith.constant 1.19823778 : f32
    %196 = vector.broadcast %cst_62 : f32 to vector<32x256xf32>
    %197 = arith.addf %195, %196 : vector<32x256xf32>
    %cst_63 = arith.constant 1.04803646 : f32
    %198 = vector.broadcast %cst_63 : f32 to vector<32x256xf32>
    %199 = arith.mulf %14, %198 : vector<32x256xf32>
    %cst_64 = arith.constant 1.000000e+00 : f32
    %200 = vector.broadcast %cst_64 : f32 to vector<32x256xf32>
    %201 = arith.addf %199, %200 : vector<32x256xf32>
    %cst_65 = arith.constant 1.17330122 : f32
    %202 = vector.broadcast %cst_65 : f32 to vector<32x256xf32>
    %203 = arith.mulf %14, %202 : vector<32x256xf32>
    %cst_66 = arith.constant 5.000000e-01 : f32
    %204 = vector.broadcast %cst_66 : f32 to vector<32x256xf32>
    %205 = arith.addf %203, %204 : vector<32x256xf32>
    %cst_67 = arith.constant 1.04803646 : f32
    %206 = vector.broadcast %cst_67 : f32 to vector<32x256xf32>
    %207 = arith.mulf %14, %206 : vector<32x256xf32>
    %cst_68 = arith.constant 1.45829904E-16 : f32
    %208 = vector.broadcast %cst_68 : f32 to vector<32x256xf32>
    %209 = arith.addf %207, %208 : vector<32x256xf32>
    %cst_69 = arith.constant 0.465185225 : f32
    %210 = vector.broadcast %cst_69 : f32 to vector<32x256xf32>
    %211 = arith.mulf %14, %210 : vector<32x256xf32>
    %cst_70 = arith.constant -0.198237762 : f32
    %212 = vector.broadcast %cst_70 : f32 to vector<32x256xf32>
    %213 = arith.addf %211, %212 : vector<32x256xf32>
    %cst_71 = arith.constant 0.616143942 : f32
    %214 = vector.broadcast %cst_71 : f32 to vector<32x256xf32>
    %215 = arith.mulf %14, %214 : vector<32x256xf32>
    %cst_72 = arith.constant -0.587903142 : f32
    %216 = vector.broadcast %cst_72 : f32 to vector<32x256xf32>
    %217 = arith.addf %215, %216 : vector<32x256xf32>
    %cst_73 = arith.constant 3.750000e+02 : f32
    %218 = vector.broadcast %cst_73 : f32 to vector<32x256xf32>
    %219 = arith.mulf %14, %218 : vector<32x256xf32>
    %cst_74 = arith.constant -965.935974 : f32
    %220 = vector.broadcast %cst_74 : f32 to vector<32x256xf32>
    %221 = arith.addf %219, %220 : vector<32x256xf32>
    %cst_75 = arith.constant 3.750000e+02 : f32
    %222 = vector.broadcast %cst_75 : f32 to vector<32x256xf32>
    %223 = arith.mulf %14, %222 : vector<32x256xf32>
    %cst_76 = arith.constant -966.435974 : f32
    %224 = vector.broadcast %cst_76 : f32 to vector<32x256xf32>
    %225 = arith.addf %223, %224 : vector<32x256xf32>
    %cst_77 = arith.constant 1.000000e+00 : f32
    %226 = vector.broadcast %cst_77 : f32 to vector<32x256xf32>
    %227 = arith.subf %226, %189 : vector<32x256xf32>
    %cst_78 = arith.constant 1.000000e+00 : f32
    %228 = vector.broadcast %cst_78 : f32 to vector<32x256xf32>
    %229 = arith.subf %228, %193 : vector<32x256xf32>
    %cst_79 = arith.constant 1.000000e+00 : f32
    %230 = vector.broadcast %cst_79 : f32 to vector<32x256xf32>
    %231 = arith.subf %230, %197 : vector<32x256xf32>
    %cst_80 = arith.constant 1.000000e+00 : f32
    %232 = vector.broadcast %cst_80 : f32 to vector<32x256xf32>
    %233 = arith.subf %232, %201 : vector<32x256xf32>
    %cst_81 = arith.constant 1.000000e+00 : f32
    %234 = vector.broadcast %cst_81 : f32 to vector<32x256xf32>
    %235 = arith.subf %234, %205 : vector<32x256xf32>
    %cst_82 = arith.constant 1.000000e+00 : f32
    %236 = vector.broadcast %cst_82 : f32 to vector<32x256xf32>
    %237 = arith.subf %236, %209 : vector<32x256xf32>
    %cst_83 = arith.constant 1.000000e+00 : f32
    %238 = vector.broadcast %cst_83 : f32 to vector<32x256xf32>
    %239 = arith.subf %238, %213 : vector<32x256xf32>
    %cst_84 = arith.constant 1.000000e+00 : f32
    %240 = vector.broadcast %cst_84 : f32 to vector<32x256xf32>
    %241 = arith.subf %240, %217 : vector<32x256xf32>
    %cst_85 = arith.constant 1.000000e+00 : f32
    %242 = vector.broadcast %cst_85 : f32 to vector<32x256xf32>
    %243 = arith.subf %242, %221 : vector<32x256xf32>
    %cst_86 = arith.constant 1.000000e+00 : f32
    %244 = vector.broadcast %cst_86 : f32 to vector<32x256xf32>
    %245 = arith.subf %244, %225 : vector<32x256xf32>
    %246 = arith.mulf %185, %151 : vector<32x256xf32>
    %247 = arith.mulf %227, %154 : vector<32x256xf32>
    %248 = arith.addf %246, %247 : vector<32x256xf32>
    %249 = arith.mulf %189, %154 : vector<32x256xf32>
    %250 = arith.mulf %229, %157 : vector<32x256xf32>
    %251 = arith.addf %249, %250 : vector<32x256xf32>
    %252 = arith.mulf %193, %157 : vector<32x256xf32>
    %253 = arith.mulf %231, %160 : vector<32x256xf32>
    %254 = arith.addf %252, %253 : vector<32x256xf32>
    %255 = arith.mulf %197, %160 : vector<32x256xf32>
    %256 = arith.mulf %233, %163 : vector<32x256xf32>
    %257 = arith.addf %255, %256 : vector<32x256xf32>
    %258 = arith.mulf %201, %163 : vector<32x256xf32>
    %259 = arith.mulf %235, %166 : vector<32x256xf32>
    %260 = arith.addf %258, %259 : vector<32x256xf32>
    %261 = arith.mulf %205, %166 : vector<32x256xf32>
    %262 = arith.mulf %237, %169 : vector<32x256xf32>
    %263 = arith.addf %261, %262 : vector<32x256xf32>
    %264 = arith.mulf %209, %169 : vector<32x256xf32>
    %265 = arith.mulf %239, %172 : vector<32x256xf32>
    %266 = arith.addf %264, %265 : vector<32x256xf32>
    %267 = arith.mulf %213, %172 : vector<32x256xf32>
    %268 = arith.mulf %241, %175 : vector<32x256xf32>
    %269 = arith.addf %267, %268 : vector<32x256xf32>
    %270 = arith.mulf %217, %175 : vector<32x256xf32>
    %271 = arith.mulf %243, %178 : vector<32x256xf32>
    %272 = arith.addf %270, %271 : vector<32x256xf32>
    %273 = arith.mulf %221, %178 : vector<32x256xf32>
    %274 = arith.mulf %245, %181 : vector<32x256xf32>
    %275 = arith.addf %273, %274 : vector<32x256xf32>
    %cst_87 = arith.constant 2.500000e+02 : f32
    %276 = vector.broadcast %cst_87 : f32 to vector<32x256xf32>
    %277 = arith.mulf %14, %276 : vector<32x256xf32>
    %cst_88 = arith.constant 644.957336 : f32
    %278 = vector.broadcast %cst_88 : f32 to vector<32x256xf32>
    %279 = arith.addf %277, %278 : vector<32x256xf32>
    %cst_89 = arith.constant 0.615638196 : f32
    %280 = vector.broadcast %cst_89 : f32 to vector<32x256xf32>
    %281 = arith.mulf %14, %280 : vector<32x256xf32>
    %cst_90 = arith.constant 1.58742058 : f32
    %282 = vector.broadcast %cst_90 : f32 to vector<32x256xf32>
    %283 = arith.addf %281, %282 : vector<32x256xf32>
    %cst_91 = arith.constant 0.464896888 : f32
    %284 = vector.broadcast %cst_91 : f32 to vector<32x256xf32>
    %285 = arith.mulf %14, %284 : vector<32x256xf32>
    %cst_92 = arith.constant 1.19811487 : f32
    %286 = vector.broadcast %cst_92 : f32 to vector<32x256xf32>
    %287 = arith.addf %285, %286 : vector<32x256xf32>
    %cst_93 = arith.constant 0.388224483 : f32
    %288 = vector.broadcast %cst_93 : f32 to vector<32x256xf32>
    %289 = arith.mulf %14, %288 : vector<32x256xf32>
    %cst_94 = arith.constant 1.000000e+00 : f32
    %290 = vector.broadcast %cst_94 : f32 to vector<32x256xf32>
    %291 = arith.addf %289, %290 : vector<32x256xf32>
    %cst_95 = arith.constant 0.724473238 : f32
    %292 = vector.broadcast %cst_95 : f32 to vector<32x256xf32>
    %293 = arith.mulf %14, %292 : vector<32x256xf32>
    %cst_96 = arith.constant 0.691267192 : f32
    %294 = vector.broadcast %cst_96 : f32 to vector<32x256xf32>
    %295 = arith.addf %293, %294 : vector<32x256xf32>
    %cst_97 = arith.constant 0.724473238 : f32
    %296 = vector.broadcast %cst_97 : f32 to vector<32x256xf32>
    %297 = arith.mulf %14, %296 : vector<32x256xf32>
    %cst_98 = arith.constant 0.308732808 : f32
    %298 = vector.broadcast %cst_98 : f32 to vector<32x256xf32>
    %299 = arith.addf %297, %298 : vector<32x256xf32>
    %cst_99 = arith.constant 0.388224483 : f32
    %300 = vector.broadcast %cst_99 : f32 to vector<32x256xf32>
    %301 = arith.mulf %14, %300 : vector<32x256xf32>
    %cst_100 = arith.constant 5.40198141E-17 : f32
    %302 = vector.broadcast %cst_100 : f32 to vector<32x256xf32>
    %303 = arith.addf %301, %302 : vector<32x256xf32>
    %cst_101 = arith.constant 0.464896888 : f32
    %304 = vector.broadcast %cst_101 : f32 to vector<32x256xf32>
    %305 = arith.mulf %14, %304 : vector<32x256xf32>
    %cst_102 = arith.constant -0.198114887 : f32
    %306 = vector.broadcast %cst_102 : f32 to vector<32x256xf32>
    %307 = arith.addf %305, %306 : vector<32x256xf32>
    %cst_103 = arith.constant 0.615638196 : f32
    %308 = vector.broadcast %cst_103 : f32 to vector<32x256xf32>
    %309 = arith.mulf %14, %308 : vector<32x256xf32>
    %cst_104 = arith.constant -0.587420583 : f32
    %310 = vector.broadcast %cst_104 : f32 to vector<32x256xf32>
    %311 = arith.addf %309, %310 : vector<32x256xf32>
    %cst_105 = arith.constant 2.500000e+02 : f32
    %312 = vector.broadcast %cst_105 : f32 to vector<32x256xf32>
    %313 = arith.mulf %14, %312 : vector<32x256xf32>
    %cst_106 = arith.constant -643.957336 : f32
    %314 = vector.broadcast %cst_106 : f32 to vector<32x256xf32>
    %315 = arith.addf %313, %314 : vector<32x256xf32>
    %cst_107 = arith.constant 1.000000e+00 : f32
    %316 = vector.broadcast %cst_107 : f32 to vector<32x256xf32>
    %317 = arith.subf %316, %283 : vector<32x256xf32>
    %cst_108 = arith.constant 1.000000e+00 : f32
    %318 = vector.broadcast %cst_108 : f32 to vector<32x256xf32>
    %319 = arith.subf %318, %287 : vector<32x256xf32>
    %cst_109 = arith.constant 1.000000e+00 : f32
    %320 = vector.broadcast %cst_109 : f32 to vector<32x256xf32>
    %321 = arith.subf %320, %291 : vector<32x256xf32>
    %cst_110 = arith.constant 1.000000e+00 : f32
    %322 = vector.broadcast %cst_110 : f32 to vector<32x256xf32>
    %323 = arith.subf %322, %295 : vector<32x256xf32>
    %cst_111 = arith.constant 1.000000e+00 : f32
    %324 = vector.broadcast %cst_111 : f32 to vector<32x256xf32>
    %325 = arith.subf %324, %299 : vector<32x256xf32>
    %cst_112 = arith.constant 1.000000e+00 : f32
    %326 = vector.broadcast %cst_112 : f32 to vector<32x256xf32>
    %327 = arith.subf %326, %303 : vector<32x256xf32>
    %cst_113 = arith.constant 1.000000e+00 : f32
    %328 = vector.broadcast %cst_113 : f32 to vector<32x256xf32>
    %329 = arith.subf %328, %307 : vector<32x256xf32>
    %cst_114 = arith.constant 1.000000e+00 : f32
    %330 = vector.broadcast %cst_114 : f32 to vector<32x256xf32>
    %331 = arith.subf %330, %311 : vector<32x256xf32>
    %cst_115 = arith.constant 1.000000e+00 : f32
    %332 = vector.broadcast %cst_115 : f32 to vector<32x256xf32>
    %333 = arith.subf %332, %315 : vector<32x256xf32>
    %334 = arith.mulf %279, %248 : vector<32x256xf32>
    %335 = arith.mulf %317, %251 : vector<32x256xf32>
    %336 = arith.addf %334, %335 : vector<32x256xf32>
    %337 = arith.mulf %283, %251 : vector<32x256xf32>
    %338 = arith.mulf %319, %254 : vector<32x256xf32>
    %339 = arith.addf %337, %338 : vector<32x256xf32>
    %340 = arith.mulf %287, %254 : vector<32x256xf32>
    %341 = arith.mulf %321, %257 : vector<32x256xf32>
    %342 = arith.addf %340, %341 : vector<32x256xf32>
    %343 = arith.mulf %291, %257 : vector<32x256xf32>
    %344 = arith.mulf %323, %260 : vector<32x256xf32>
    %345 = arith.addf %343, %344 : vector<32x256xf32>
    %346 = arith.mulf %295, %260 : vector<32x256xf32>
    %347 = arith.mulf %325, %263 : vector<32x256xf32>
    %348 = arith.addf %346, %347 : vector<32x256xf32>
    %349 = arith.mulf %299, %263 : vector<32x256xf32>
    %350 = arith.mulf %327, %266 : vector<32x256xf32>
    %351 = arith.addf %349, %350 : vector<32x256xf32>
    %352 = arith.mulf %303, %266 : vector<32x256xf32>
    %353 = arith.mulf %329, %269 : vector<32x256xf32>
    %354 = arith.addf %352, %353 : vector<32x256xf32>
    %355 = arith.mulf %307, %269 : vector<32x256xf32>
    %356 = arith.mulf %331, %272 : vector<32x256xf32>
    %357 = arith.addf %355, %356 : vector<32x256xf32>
    %358 = arith.mulf %311, %272 : vector<32x256xf32>
    %359 = arith.mulf %333, %275 : vector<32x256xf32>
    %360 = arith.addf %358, %359 : vector<32x256xf32>
    %cst_116 = arith.constant -2.57582927 : f32
    %361 = vector.broadcast %cst_116 : f32 to vector<32x256xf32>
    %362 = arith.subf %361, %14 : vector<32x256xf32>
    %cst_117 = arith.constant 0.000000e+00 : f32
    %363 = vector.broadcast %cst_117 : f32 to vector<32x256xf32>
    %364 = arith.maximumf %362, %363 : vector<32x256xf32>
    %cst_118 = arith.constant 2.57582927 : f32
    %365 = vector.broadcast %cst_118 : f32 to vector<32x256xf32>
    %366 = arith.subf %14, %365 : vector<32x256xf32>
    %cst_119 = arith.constant 0.000000e+00 : f32
    %367 = vector.broadcast %cst_119 : f32 to vector<32x256xf32>
    %368 = arith.maximumf %366, %367 : vector<32x256xf32>
    %369 = tpu.concatenate %8, %336, %339, %342, %345, %348, %351, %354, %357, %360, %364, %368 in 0 : vector<32x256xf32>, vector<32x256xf32>, vector<32x256xf32>, vector<32x256xf32>, vector<32x256xf32>, vector<32x256xf32>, vector<32x256xf32>, vector<32x256xf32>, vector<32x256xf32>, vector<32x256xf32>, vector<32x256xf32>, vector<32x256xf32> -> vector<384x256xf32>
    %c0_120 = arith.constant 0 : index
    %c0_121 = arith.constant 0 : index
    %370 = vector.load %arg4[%c0_120, %c0_121] : memref<16x384xf32, #tpu.memory_space<vmem>>, vector<16x384xf32>
    %cst_122 = arith.constant dense<0.000000e+00> : vector<16x256xf32>
    %371 = tpu.matmul %370, %369, %cst_122 {dimension_numbers = #tpu.dot_dimension_numbers<[1], [0], [0], [1], [0, 0, 1, 1], [], []>} : vector<16x384xf32>, vector<384x256xf32>, vector<16x256xf32> -> vector<16x256xf32>
    %c0_123 = arith.constant 0 : index
    %c0_124 = arith.constant 0 : index
    %372 = vector.load %arg5[%c0_123, %c0_124] : memref<16x1xf32, #tpu.memory_space<vmem>>, vector<16x1xf32>
    %373 = vector.broadcast %372 : vector<16x1xf32> to vector<16x256xf32>
    %374 = arith.addf %371, %373 : vector<16x256xf32>
    %c0_125 = arith.constant 0 : index
    %c0_126 = arith.constant 0 : index
    %375 = vector.load %arg6[%c0_125, %c0_126] : memref<16x256xf32, #tpu.memory_space<vmem>>, vector<16x256xf32>
    tpu.vector_store %arg6[%c0_125, %c0_126], %374 {strides = array<i32>} : memref<16x256xf32, #tpu.memory_space<vmem>>, vector<16x256xf32>,
    return
  }
  func.func @transform_0(%arg0: i32) -> (i32, i32) {
    %c0_i32 = arith.constant 0 : i32
    %c0_i32_0 = arith.constant 0 : i32
    return %c0_i32, %arg0 : i32, i32
  }
  func.func @transform_1(%arg0: i32) -> (i32, i32) {
    %c0_i32 = arith.constant 0 : i32
    %c0_i32_0 = arith.constant 0 : i32
    %c0_i32_1 = arith.constant 0 : i32
    return %c0_i32, %c0_i32_0 : i32, i32
  }
  func.func @transform_2(%arg0: i32) -> (i32, i32) {
    %c0_i32 = arith.constant 0 : i32
    %c0_i32_0 = arith.constant 0 : i32
    %c0_i32_1 = arith.constant 0 : i32
    return %c0_i32, %c0_i32_0 : i32, i32
  }
  func.func @transform_3(%arg0: i32) -> (i32, i32) {
    %c0_i32 = arith.constant 0 : i32
    %c0_i32_0 = arith.constant 0 : i32
    %c0_i32_1 = arith.constant 0 : i32
    return %c0_i32, %c0_i32_0 : i32, i32
  }
  func.func @transform_4(%arg0: i32) -> (i32, i32) {
    %c0_i32 = arith.constant 0 : i32
    %c0_i32_0 = arith.constant 0 : i32
    %c0_i32_1 = arith.constant 0 : i32
    return %c0_i32, %c0_i32_0 : i32, i32
  }
  func.func @transform_5(%arg0: i32) -> (i32, i32) {
    %c0_i32 = arith.constant 0 : i32
    %c0_i32_0 = arith.constant 0 : i32
    return %c0_i32, %arg0 : i32, i32
  }
}

</mosaic_0001>

<llo_original>
// kernel: tpu_custom_call.1
$region0: #{tpu_custom_call.1}
  #allocation0 [shape = 'u32[]', space=smem, size = 0x4, offset = 0x4, fixed_abs, tag = 'smem constant byte address 0x4 - core index']
  #allocation1 [shape = 'u32[72,128]{1,0:T(1,128)}', space=vmem, size = 0x9000, scoped, tag = 'internal scratch']
  %s0 = inlined_call_operand.vmem [shape: f32[32,256], index: 0, kind: input, shape index: {}]
  %s1 = inlined_call_operand.vmem [shape: f32[32,1], index: 1, kind: input, shape index: {}]
  %s2 = inlined_call_operand.vmem [shape: f32[32,1], index: 2, kind: input, shape index: {}]
  %s3 = inlined_call_operand.hbm [shape: f32[16,384], index: 3, kind: input, shape index: {}]
  %s4 = inlined_call_operand.vmem [shape: f32[16,1], index: 4, kind: input, shape index: {}]
  %s5 = inlined_call_operand.hbm [shape: f32[16,256], index: 5, kind: output, shape index: {}]
  %s6 = sld [smem:[#allocation0]]
  $region34: #{tpu_custom_call.1} parent=0
    _
  %s8 = ssub.s32 1, %s6
  %s9 = scalar_select 0, %s8, %s6
  $region1: #{tpu_custom_call.1} parent=0
    #allocation2 [shape = 'u8[24576]{0}', space=vmem, size = 0x6000, scoped, tag = 'input window, operand 3, single buffered']
    #allocation3 [shape = 's32[1]{0}', space=sflag, size = 0x4, scoped, tag = 'scoped memory for tpu_custom_call.1']
    #allocation4 [shape = 's32[1]{0}', space=sflag, size = 0x4, scoped, tag = 'scoped memory for tpu_custom_call.1']
    #allocation5 [shape = 'u8[16384]{0}', space=vmem, size = 0x4000, scoped, tag = 'output window, operand 0, single buffered']
    %10 = vsyncpa [#allocation3], 0
    %11 = vsyncpa [#allocation4], 0
    // Predicated region
    $region2: #{tpu_custom_call.1} parent=1 // pred_check
      _
    $region3: #{tpu_custom_call.1} parent=1 // pred_check_branch
      %13 = sbr.rel (0) target = $region5
    $region4: #{tpu_custom_call.1} parent=1 // pred_region
      _
    $region5: #{tpu_custom_call.1} parent=1 // pred_fallthru
      _
    // Predicated region
    $region6: #{tpu_custom_call.1} parent=1 // pred_check
      _
    $region7: #{tpu_custom_call.1} parent=1 // pred_check_branch
      %15 = sbr.rel (0) target = $region9
    $region8: #{tpu_custom_call.1} parent=1 // pred_region
      _
    $region9: #{tpu_custom_call.1} parent=1 // pred_fallthru
      _
    // Predicated region
    $region10: #{tpu_custom_call.1} parent=1 // pred_check
      _
    $region11: #{tpu_custom_call.1} parent=1 // pred_check_branch
      %17 = sbr.rel (0) target = $region13
    $region12: #{tpu_custom_call.1} parent=1 // pred_region
      _
    $region13: #{tpu_custom_call.1} parent=1 // pred_fallthru
      _
    // Predicated region
    $region14: #{tpu_custom_call.1} parent=1 // pred_check
      _
    $region15: #{tpu_custom_call.1} parent=1 // pred_check_branch
      %19 = sbr.rel (0) target = $region17
    $region16: #{tpu_custom_call.1} parent=1 // pred_region
      %21 = vsyncadd [#allocation3], 0
      %s22 = sshll.u32 %s3, 4
      %s23 = int_to_ptr.hbm [resolvable:$true] %s22
      %s24 = sshll.u32 [#allocation2], 4
      %s25 = int_to_ptr.vmem [resolvable:$true] %s24
      %30 = dma.hbm_to_vmem [thread:$0]  %s23, 768, %s25, [#allocation3], 384, 384, 24
    $region17: #{tpu_custom_call.1} parent=1 // pred_fallthru
      _
    // Predicated region
    $region18: #{tpu_custom_call.1} parent=1 // pred_check
      _
    $region19: #{tpu_custom_call.1} parent=1 // pred_check_branch
      %32 = sbr.rel (0) target = $region21
    $region20: #{tpu_custom_call.1} parent=1 // pred_region
      _
    $region21: #{tpu_custom_call.1} parent=1 // pred_fallthru
      _
    // Predicated region
    $region22: #{tpu_custom_call.1} parent=1 // pred_check
      _
    $region23: #{tpu_custom_call.1} parent=1 // pred_check_branch
      %34 = sbr.rel (0) target = $region25
    $region24: #{tpu_custom_call.1} parent=1 // pred_region
      %36 = dma.done [#allocation3], 768
    $region25: #{tpu_custom_call.1} parent=1 // pred_fallthru
      _
    %v37 = vld [vmem:[%s0] sm:$0xff]
    %v38 = vld [vmem:[%s0 + $0x8] sm:$0xff]
    %v39 = vld [vmem:[%s0 + $0x10] sm:$0xff]
    %v40 = vld [vmem:[%s0 + $0x18] sm:$0xff]
    %v41 = vld [vmem:[%s0 + $0x20] sm:$0xff]
    %v42 = vld [vmem:[%s0 + $0x28] sm:$0xff]
    %v43 = vld [vmem:[%s0 + $0x30] sm:$0xff]
    %v44 = vld [vmem:[%s0 + $0x38] sm:$0xff]
    %v45 = vmul.f32 %v37, 0.5
    %v46 = vmul.f32 %v38, 0.5
    %v47 = vmul.f32 %v39, 0.5
    %v48 = vmul.f32 %v40, 0.5
    %v49 = vmul.f32 %v41, 0.5
    %v50 = vmul.f32 %v42, 0.5
    %v51 = vmul.f32 %v43, 0.5
    %v52 = vmul.f32 %v44, 0.5
    %v53 = vtanh.pop %v45
    %v54 = vtanh.pop %v46
    %v55 = vtanh.pop %v47
    %v56 = vtanh.pop %v48
    %v57 = vtanh.pop %v49
    %v58 = vtanh.pop %v50
    %v59 = vtanh.pop %v51
    %v60 = vtanh.pop %v52
    %v61 = vmul.f32 %v53, 0.5
    %v62 = vmul.f32 %v54, 0.5
    %v63 = vmul.f32 %v55, 0.5
    %v64 = vmul.f32 %v56, 0.5
    %v65 = vmul.f32 %v57, 0.5
    %v66 = vmul.f32 %v58, 0.5
    %v67 = vmul.f32 %v59, 0.5
    %v68 = vmul.f32 %v60, 0.5
    %v69 = vadd.f32 %v61, 0.5
    %v70 = vadd.f32 %v62, 0.5
    %v71 = vadd.f32 %v63, 0.5
    %v72 = vadd.f32 %v64, 0.5
    %v73 = vadd.f32 %v65, 0.5
    %v74 = vadd.f32 %v66, 0.5
    %v75 = vadd.f32 %v67, 0.5
    %v76 = vadd.f32 %v68, 0.5
    %v77 = vmul.f32 %v37, %v69
    %v78 = vmul.f32 %v38, %v70
    %v79 = vmul.f32 %v39, %v71
    %v80 = vmul.f32 %v40, %v72
    %v81 = vmul.f32 %v41, %v73
    %v82 = vmul.f32 %v42, %v74
    %v83 = vmul.f32 %v43, %v75
    %v84 = vmul.f32 %v44, %v76
    %v85 = vld [vmem:[%s1] sm:$0xff]
    %v86 = vld [vmem:[%s1 + $0x8] sm:$0xff]
    %v87 = vld [vmem:[%s1 + $0x10] sm:$0xff]
    %v88 = vld [vmem:[%s1 + $0x18] sm:$0xff]
    %90 = vset.pattern.permute.xlu0 0
    %91 = vperm.xlu0 %90, %v85
    %v92 = vpop.permute.xlu0 %91
    %95 = vset.pattern.permute.xlu0 0
    %96 = vperm.xlu0 %95, %v86
    %v97 = vpop.permute.xlu0 %96
    %100 = vset.pattern.permute.xlu0 0
    %101 = vperm.xlu0 %100, %v87
    %v102 = vpop.permute.xlu0 %101
    %105 = vset.pattern.permute.xlu0 0
    %106 = vperm.xlu0 %105, %v88
    %v107 = vpop.permute.xlu0 %106
    %v109 = vsub.f32 %v37, %v92
    %v110 = vsub.f32 %v38, %v92
    %v111 = vsub.f32 %v39, %v97
    %v112 = vsub.f32 %v40, %v97
    %v113 = vsub.f32 %v41, %v102
    %v114 = vsub.f32 %v42, %v102
    %v115 = vsub.f32 %v43, %v107
    %v116 = vsub.f32 %v44, %v107
    %v117 = vld [vmem:[%s2] sm:$0xff]
    %v118 = vld [vmem:[%s2 + $0x8] sm:$0xff]
    %v119 = vld [vmem:[%s2 + $0x10] sm:$0xff]
    %v120 = vld [vmem:[%s2 + $0x18] sm:$0xff]
    %122 = vset.pattern.permute.xlu0 0
    %123 = vperm.xlu0 %122, %v117
    %v124 = vpop.permute.xlu0 %123
    %127 = vset.pattern.permute.xlu0 0
    %128 = vperm.xlu0 %127, %v118
    %v129 = vpop.permute.xlu0 %128
    %132 = vset.pattern.permute.xlu0 0
    %133 = vperm.xlu0 %132, %v119
    %v134 = vpop.permute.xlu0 %133
    %137 = vset.pattern.permute.xlu0 0
    %138 = vperm.xlu0 %137, %v120
    %v139 = vpop.permute.xlu0 %138
    %v141 = vmul.f32 %v109, %v124
    %v142 = vmul.f32 %v110, %v124
    %v143 = vmul.f32 %v111, %v129
    %v144 = vmul.f32 %v112, %v129
    %v145 = vmul.f32 %v113, %v134
    %v146 = vmul.f32 %v114, %v134
    %v147 = vmul.f32 %v115, %v139
    %v148 = vmul.f32 %v116, %v139
    %vm149 = vcmp.ge.f32.partialorder %v141, -2.5798292
    %vm150 = vcmp.ge.f32.partialorder %v142, -2.5798292
    %vm151 = vcmp.ge.f32.partialorder %v143, -2.5798292
    %vm152 = vcmp.ge.f32.partialorder %v144, -2.5798292
    %vm153 = vcmp.ge.f32.partialorder %v145, -2.5798292
    %vm154 = vcmp.ge.f32.partialorder %v146, -2.5798292
    %vm155 = vcmp.ge.f32.partialorder %v147, -2.5798292
    %vm156 = vcmp.ge.f32.partialorder %v148, -2.5798292
    %v157 = vsel %vm149, 1, 0
    %v158 = vsel %vm150, 1, 0
    %v159 = vsel %vm151, 1, 0
    %v160 = vsel %vm152, 1, 0
    %v161 = vsel %vm153, 1, 0
    %v162 = vsel %vm154, 1, 0
    %v163 = vsel %vm155, 1, 0
    %v164 = vsel %vm156, 1, 0
    %v165 = vcvt.s32.f32 %v157
    %v166 = vcvt.s32.f32 %v158
    %v167 = vcvt.s32.f32 %v159
    %v168 = vcvt.s32.f32 %v160
    %v169 = vcvt.s32.f32 %v161
    %v170 = vcvt.s32.f32 %v162
    %v171 = vcvt.s32.f32 %v163
    %v172 = vcvt.s32.f32 %v164
    %vm173 = vcmp.ge.f32.partialorder %v141, -2.578496
    %vm174 = vcmp.ge.f32.partialorder %v142, -2.578496
    %vm175 = vcmp.ge.f32.partialorder %v143, -2.578496
    %vm176 = vcmp.ge.f32.partialorder %v144, -2.578496
    %vm177 = vcmp.ge.f32.partialorder %v145, -2.578496
    %vm178 = vcmp.ge.f32.partialorder %v146, -2.578496
    %vm179 = vcmp.ge.f32.partialorder %v147, -2.578496
    %vm180 = vcmp.ge.f32.partialorder %v148, -2.578496
    %v181 = vsel %vm173, 1, 0
    %v182 = vsel %vm174, 1, 0
    %v183 = vsel %vm175, 1, 0
    %v184 = vsel %vm176, 1, 0
    %v185 = vsel %vm177, 1, 0
    %v186 = vsel %vm178, 1, 0
    %v187 = vsel %vm179, 1, 0
    %v188 = vsel %vm180, 1, 0
    %v189 = vcvt.s32.f32 %v181
    %v190 = vcvt.s32.f32 %v182
    %v191 = vcvt.s32.f32 %v183
    %v192 = vcvt.s32.f32 %v184
    %v193 = vcvt.s32.f32 %v185
    %v194 = vcvt.s32.f32 %v186
    %v195 = vcvt.s32.f32 %v187
    %v196 = vcvt.s32.f32 %v188
    %vm197 = vcmp.ge.f32.partialorder %v141, -2.5771627
    %vm198 = vcmp.ge.f32.partialorder %v142, -2.5771627
    %vm199 = vcmp.ge.f32.partialorder %v143, -2.5771627
    %vm200 = vcmp.ge.f32.partialorder %v144, -2.5771627
    %vm201 = vcmp.ge.f32.partialorder %v145, -2.5771627
    %vm202 = vcmp.ge.f32.partialorder %v146, -2.5771627
    %vm203 = vcmp.ge.f32.partialorder %v147, -2.5771627
    %vm204 = vcmp.ge.f32.partialorder %v148, -2.5771627
    %v205 = vsel %vm197, 1, 0
    %v206 = vsel %vm198, 1, 0
    %v207 = vsel %vm199, 1, 0
    %v208 = vsel %vm200, 1, 0
    %v209 = vsel %vm201, 1, 0
    %v210 = vsel %vm202, 1, 0
    %v211 = vsel %vm203, 1, 0
    %v212 = vsel %vm204, 1, 0
    %v213 = vcvt.s32.f32 %v205
    %v214 = vcvt.s32.f32 %v206
    %v215 = vcvt.s32.f32 %v207
    %v216 = vcvt.s32.f32 %v208
    %v217 = vcvt.s32.f32 %v209
    %v218 = vcvt.s32.f32 %v210
    %v219 = vcvt.s32.f32 %v211
    %v220 = vcvt.s32.f32 %v212
    %vm221 = vcmp.ge.f32.partialorder %v141, -2.5758293
    %vm222 = vcmp.ge.f32.partialorder %v142, -2.5758293
    %vm223 = vcmp.ge.f32.partialorder %v143, -2.5758293
    %vm224 = vcmp.ge.f32.partialorder %v144, -2.5758293
    %vm225 = vcmp.ge.f32.partialorder %v145, -2.5758293
    %vm226 = vcmp.ge.f32.partialorder %v146, -2.5758293
    %vm227 = vcmp.ge.f32.partialorder %v147, -2.5758293
    %vm228 = vcmp.ge.f32.partialorder %v148, -2.5758293
    %v229 = vsel %vm221, 1, 0
    %v230 = vsel %vm222, 1, 0
    %v231 = vsel %vm223, 1, 0
    %v232 = vsel %vm224, 1, 0
    %v233 = vsel %vm225, 1, 0
    %v234 = vsel %vm226, 1, 0
    %v235 = vsel %vm227, 1, 0
    %v236 = vsel %vm228, 1, 0
    %v237 = vcvt.s32.f32 %v229
    %v238 = vcvt.s32.f32 %v230
    %v239 = vcvt.s32.f32 %v231
    %v240 = vcvt.s32.f32 %v232
    %v241 = vcvt.s32.f32 %v233
    %v242 = vcvt.s32.f32 %v234
    %v243 = vcvt.s32.f32 %v235
    %v244 = vcvt.s32.f32 %v236
    %vm245 = vcmp.ge.f32.partialorder %v141, -0.9541653
    %vm246 = vcmp.ge.f32.partialorder %v142, -0.9541653
    %vm247 = vcmp.ge.f32.partialorder %v143, -0.9541653
    %vm248 = vcmp.ge.f32.partialorder %v144, -0.9541653
    %vm249 = vcmp.ge.f32.partialorder %v145, -0.9541653
    %vm250 = vcmp.ge.f32.partialorder %v146, -0.9541653
    %vm251 = vcmp.ge.f32.partialorder %v147, -0.9541653
    %vm252 = vcmp.ge.f32.partialorder %v148, -0.9541653
    %v253 = vsel %vm245, 1, 0
    %v254 = vsel %vm246, 1, 0
    %v255 = vsel %vm247, 1, 0
    %v256 = vsel %vm248, 1, 0
    %v257 = vsel %vm249, 1, 0
    %v258 = vsel %vm250, 1, 0
    %v259 = vsel %vm251, 1, 0
    %v260 = vsel %vm252, 1, 0
    %v261 = vcvt.s32.f32 %v253
    %v262 = vcvt.s32.f32 %v254
    %v263 = vcvt.s32.f32 %v255
    %v264 = vcvt.s32.f32 %v256
    %v265 = vcvt.s32.f32 %v257
    %v266 = vcvt.s32.f32 %v258
    %v267 = vcvt.s32.f32 %v259
    %v268 = vcvt.s32.f32 %v260
    %vm269 = vcmp.ge.f32.partialorder %v141, -0.426148
    %vm270 = vcmp.ge.f32.partialorder %v142, -0.426148
    %vm271 = vcmp.ge.f32.partialorder %v143, -0.426148
    %vm272 = vcmp.ge.f32.partialorder %v144, -0.426148
    %vm273 = vcmp.ge.f32.partialorder %v145, -0.426148
    %vm274 = vcmp.ge.f32.partialorder %v146, -0.426148
    %vm275 = vcmp.ge.f32.partialorder %v147, -0.426148
    %vm276 = vcmp.ge.f32.partialorder %v148, -0.426148
    %v277 = vsel %vm269, 1, 0
    %v278 = vsel %vm270, 1, 0
    %v279 = vsel %vm271, 1, 0
    %v280 = vsel %vm272, 1, 0
    %v281 = vsel %vm273, 1, 0
    %v282 = vsel %vm274, 1, 0
    %v283 = vsel %vm275, 1, 0
    %v284 = vsel %vm276, 1, 0
    %v285 = vcvt.s32.f32 %v277
    %v286 = vcvt.s32.f32 %v278
    %v287 = vcvt.s32.f32 %v279
    %v288 = vcvt.s32.f32 %v280
    %v289 = vcvt.s32.f32 %v281
    %v290 = vcvt.s32.f32 %v282
    %v291 = vcvt.s32.f32 %v283
    %v292 = vcvt.s32.f32 %v284
    %vm293 = vcmp.ge.f32.partialorder %v141, -1.3914582e-16
    %vm294 = vcmp.ge.f32.partialorder %v142, -1.3914582e-16
    %vm295 = vcmp.ge.f32.partialorder %v143, -1.3914582e-16
    %vm296 = vcmp.ge.f32.partialorder %v144, -1.3914582e-16
    %vm297 = vcmp.ge.f32.partialorder %v145, -1.3914582e-16
    %vm298 = vcmp.ge.f32.partialorder %v146, -1.3914582e-16
    %vm299 = vcmp.ge.f32.partialorder %v147, -1.3914582e-16
    %vm300 = vcmp.ge.f32.partialorder %v148, -1.3914582e-16
    %v301 = vsel %vm293, 1, 0
    %v302 = vsel %vm294, 1, 0
    %v303 = vsel %vm295, 1, 0
    %v304 = vsel %vm296, 1, 0
    %v305 = vsel %vm297, 1, 0
    %v306 = vsel %vm298, 1, 0
    %v307 = vsel %vm299, 1, 0
    %v308 = vsel %vm300, 1, 0
    %v309 = vcvt.s32.f32 %v301
    %v310 = vcvt.s32.f32 %v302
    %v311 = vcvt.s32.f32 %v303
    %v312 = vcvt.s32.f32 %v304
    %v313 = vcvt.s32.f32 %v305
    %v314 = vcvt.s32.f32 %v306
    %v315 = vcvt.s32.f32 %v307
    %v316 = vcvt.s32.f32 %v308
    %vm317 = vcmp.ge.f32.partialorder %v141, 0.426148
    %vm318 = vcmp.ge.f32.partialorder %v142, 0.426148
    %vm319 = vcmp.ge.f32.partialorder %v143, 0.426148
    %vm320 = vcmp.ge.f32.partialorder %v144, 0.426148
    %vm321 = vcmp.ge.f32.partialorder %v145, 0.426148
    %vm322 = vcmp.ge.f32.partialorder %v146, 0.426148
    %vm323 = vcmp.ge.f32.partialorder %v147, 0.426148
    %vm324 = vcmp.ge.f32.partialorder %v148, 0.426148
    %v325 = vsel %vm317, 1, 0
    %v326 = vsel %vm318, 1, 0
    %v327 = vsel %vm319, 1, 0
    %v328 = vsel %vm320, 1, 0
    %v329 = vsel %vm321, 1, 0
    %v330 = vsel %vm322, 1, 0
    %v331 = vsel %vm323, 1, 0
    %v332 = vsel %vm324, 1, 0
    %v333 = vcvt.s32.f32 %v325
    %v334 = vcvt.s32.f32 %v326
    %v335 = vcvt.s32.f32 %v327
    %v336 = vcvt.s32.f32 %v328
    %v337 = vcvt.s32.f32 %v329
    %v338 = vcvt.s32.f32 %v330
    %v339 = vcvt.s32.f32 %v331
    %v340 = vcvt.s32.f32 %v332
    %vm341 = vcmp.ge.f32.partialorder %v141, 0.9541653
    %vm342 = vcmp.ge.f32.partialorder %v142, 0.9541653
    %vm343 = vcmp.ge.f32.partialorder %v143, 0.9541653
    %vm344 = vcmp.ge.f32.partialorder %v144, 0.9541653
    %vm345 = vcmp.ge.f32.partialorder %v145, 0.9541653
    %vm346 = vcmp.ge.f32.partialorder %v146, 0.9541653
    %vm347 = vcmp.ge.f32.partialorder %v147, 0.9541653
    %vm348 = vcmp.ge.f32.partialorder %v148, 0.9541653
    %v349 = vsel %vm341, 1, 0
    %v350 = vsel %vm342, 1, 0
    %v351 = vsel %vm343, 1, 0
    %v352 = vsel %vm344, 1, 0
    %v353 = vsel %vm345, 1, 0
    %v354 = vsel %vm346, 1, 0
    %v355 = vsel %vm347, 1, 0
    %v356 = vsel %vm348, 1, 0
    %v357 = vcvt.s32.f32 %v349
    %v358 = vcvt.s32.f32 %v350
    %v359 = vcvt.s32.f32 %v351
    %v360 = vcvt.s32.f32 %v352
    %v361 = vcvt.s32.f32 %v353
    %v362 = vcvt.s32.f32 %v354
    %v363 = vcvt.s32.f32 %v355
    %v364 = vcvt.s32.f32 %v356
    %vm365 = vcmp.ge.f32.partialorder %v141, 2.5758293
    %vm366 = vcmp.ge.f32.partialorder %v142, 2.5758293
    %vm367 = vcmp.ge.f32.partialorder %v143, 2.5758293
    %vm368 = vcmp.ge.f32.partialorder %v144, 2.5758293
    %vm369 = vcmp.ge.f32.partialorder %v145, 2.5758293
    %vm370 = vcmp.ge.f32.partialorder %v146, 2.5758293
    %vm371 = vcmp.ge.f32.partialorder %v147, 2.5758293
    %vm372 = vcmp.ge.f32.partialorder %v148, 2.5758293
    %v373 = vsel %vm365, 1, 0
    %v374 = vsel %vm366, 1, 0
    %v375 = vsel %vm367, 1, 0
    %v376 = vsel %vm368, 1, 0
    %v377 = vsel %vm369, 1, 0
    %v378 = vsel %vm370, 1, 0
    %v379 = vsel %vm371, 1, 0
    %v380 = vsel %vm372, 1, 0
    %v381 = vcvt.s32.f32 %v373
    %v382 = vcvt.s32.f32 %v374
    %v383 = vcvt.s32.f32 %v375
    %v384 = vcvt.s32.f32 %v376
    %v385 = vcvt.s32.f32 %v377
    %v386 = vcvt.s32.f32 %v378
    %v387 = vcvt.s32.f32 %v379
    %v388 = vcvt.s32.f32 %v380
    %vm389 = vcmp.ge.f32.partialorder %v141, 2.5771627
    %vm390 = vcmp.ge.f32.partialorder %v142, 2.5771627
    %vm391 = vcmp.ge.f32.partialorder %v143, 2.5771627
    %vm392 = vcmp.ge.f32.partialorder %v144, 2.5771627
    %vm393 = vcmp.ge.f32.partialorder %v145, 2.5771627
    %vm394 = vcmp.ge.f32.partialorder %v146, 2.5771627
    %vm395 = vcmp.ge.f32.partialorder %v147, 2.5771627
    %vm396 = vcmp.ge.f32.partialorder %v148, 2.5771627
    %v397 = vsel %vm389, 1, 0
    %v398 = vsel %vm390, 1, 0
    %v399 = vsel %vm391, 1, 0
    %v400 = vsel %vm392, 1, 0
    %v401 = vsel %vm393, 1, 0
    %v402 = vsel %vm394, 1, 0
    %v403 = vsel %vm395, 1, 0
    %v404 = vsel %vm396, 1, 0
    %v405 = vcvt.s32.f32 %v397
    %v406 = vcvt.s32.f32 %v398
    %v407 = vcvt.s32.f32 %v399
    %v408 = vcvt.s32.f32 %v400
    %v409 = vcvt.s32.f32 %v401
    %v410 = vcvt.s32.f32 %v402
    %v411 = vcvt.s32.f32 %v403
    %v412 = vcvt.s32.f32 %v404
    %vm413 = vcmp.ge.f32.partialorder %v141, 2.578496
    %vm414 = vcmp.ge.f32.partialorder %v142, 2.578496
    %vm415 = vcmp.ge.f32.partialorder %v143, 2.578496
    %vm416 = vcmp.ge.f32.partialorder %v144, 2.578496
    %vm417 = vcmp.ge.f32.partialorder %v145, 2.578496
    %vm418 = vcmp.ge.f32.partialorder %v146, 2.578496
    %vm419 = vcmp.ge.f32.partialorder %v147, 2.578496
    %vm420 = vcmp.ge.f32.partialorder %v148, 2.578496
    %v421 = vsel %vm413, 1, 0
    %v422 = vsel %vm414, 1, 0
    %v423 = vsel %vm415, 1, 0
    %v424 = vsel %vm416, 1, 0
    %v425 = vsel %vm417, 1, 0
    %v426 = vsel %vm418, 1, 0
    %v427 = vsel %vm419, 1, 0
    %v428 = vsel %vm420, 1, 0
    %v429 = vcvt.s32.f32 %v421
    %v430 = vcvt.s32.f32 %v422
    %v431 = vcvt.s32.f32 %v423
    %v432 = vcvt.s32.f32 %v424
    %v433 = vcvt.s32.f32 %v425
    %v434 = vcvt.s32.f32 %v426
    %v435 = vcvt.s32.f32 %v427
    %v436 = vcvt.s32.f32 %v428
    %vm437 = vcmp.ge.f32.partialorder %v141, 2.5798292
    %vm438 = vcmp.ge.f32.partialorder %v142, 2.5798292
    %vm439 = vcmp.ge.f32.partialorder %v143, 2.5798292
    %vm440 = vcmp.ge.f32.partialorder %v144, 2.5798292
    %vm441 = vcmp.ge.f32.partialorder %v145, 2.5798292
    %vm442 = vcmp.ge.f32.partialorder %v146, 2.5798292
    %vm443 = vcmp.ge.f32.partialorder %v147, 2.5798292
    %vm444 = vcmp.ge.f32.partialorder %v148, 2.5798292
    %v445 = vsel %vm437, 1, 0
    %v446 = vsel %vm438, 1, 0
    %v447 = vsel %vm439, 1, 0
    %v448 = vsel %vm440, 1, 0
    %v449 = vsel %vm441, 1, 0
    %v450 = vsel %vm442, 1, 0
    %v451 = vsel %vm443, 1, 0
    %v452 = vsel %vm444, 1, 0
    %v453 = vcvt.s32.f32 %v445
    %v454 = vcvt.s32.f32 %v446
    %v455 = vcvt.s32.f32 %v447
    %v456 = vcvt.s32.f32 %v448
    %v457 = vcvt.s32.f32 %v449
    %v458 = vcvt.s32.f32 %v450
    %v459 = vcvt.s32.f32 %v451
    %v460 = vcvt.s32.f32 %v452
    %v461 = vsub.f32 %v165, %v189
    %v462 = vsub.f32 %v166, %v190
    %v463 = vsub.f32 %v167, %v191
    %v464 = vsub.f32 %v168, %v192
    %v465 = vsub.f32 %v169, %v193
    %v466 = vsub.f32 %v170, %v194
    %v467 = vsub.f32 %v171, %v195
    %v468 = vsub.f32 %v172, %v196
    %v469 = vsub.f32 %v189, %v213
    %v470 = vsub.f32 %v190, %v214
    %v471 = vsub.f32 %v191, %v215
    %v472 = vsub.f32 %v192, %v216
    %v473 = vsub.f32 %v193, %v217
    %v474 = vsub.f32 %v194, %v218
    %v475 = vsub.f32 %v195, %v219
    %v476 = vsub.f32 %v196, %v220
    %v477 = vsub.f32 %v213, %v237
    %v478 = vsub.f32 %v214, %v238
    %v479 = vsub.f32 %v215, %v239
    %v480 = vsub.f32 %v216, %v240
    %v481 = vsub.f32 %v217, %v241
    %v482 = vsub.f32 %v218, %v242
    %v483 = vsub.f32 %v219, %v243
    %v484 = vsub.f32 %v220, %v244
    %v485 = vsub.f32 %v237, %v261
    %v486 = vsub.f32 %v238, %v262
    %v487 = vsub.f32 %v239, %v263
    %v488 = vsub.f32 %v240, %v264
    %v489 = vsub.f32 %v241, %v265
    %v490 = vsub.f32 %v242, %v266
    %v491 = vsub.f32 %v243, %v267
    %v492 = vsub.f32 %v244, %v268
    %v493 = vsub.f32 %v261, %v285
    %v494 = vsub.f32 %v262, %v286
    %v495 = vsub.f32 %v263, %v287
    %v496 = vsub.f32 %v264, %v288
    %v497 = vsub.f32 %v265, %v289
    %v498 = vsub.f32 %v266, %v290
    %v499 = vsub.f32 %v267, %v291
    %v500 = vsub.f32 %v268, %v292
    %v501 = vsub.f32 %v285, %v309
    %v502 = vsub.f32 %v286, %v310
    %v503 = vsub.f32 %v287, %v311
    %v504 = vsub.f32 %v288, %v312
    %v505 = vsub.f32 %v289, %v313
    %v506 = vsub.f32 %v290, %v314
    %v507 = vsub.f32 %v291, %v315
    %v508 = vsub.f32 %v292, %v316
    %v509 = vsub.f32 %v309, %v333
    %v510 = vsub.f32 %v310, %v334
    %v511 = vsub.f32 %v311, %v335
    %v512 = vsub.f32 %v312, %v336
    %v513 = vsub.f32 %v313, %v337
    %v514 = vsub.f32 %v314, %v338
    %v515 = vsub.f32 %v315, %v339
    %v516 = vsub.f32 %v316, %v340
    %v517 = vsub.f32 %v333, %v357
    %v518 = vsub.f32 %v334, %v358
    %v519 = vsub.f32 %v335, %v359
    %v520 = vsub.f32 %v336, %v360
    %v521 = vsub.f32 %v337, %v361
    %v522 = vsub.f32 %v338, %v362
    %v523 = vsub.f32 %v339, %v363
    %v524 = vsub.f32 %v340, %v364
    %v525 = vsub.f32 %v357, %v381
    %v526 = vsub.f32 %v358, %v382
    %v527 = vsub.f32 %v359, %v383
    %v528 = vsub.f32 %v360, %v384
    %v529 = vsub.f32 %v361, %v385
    %v530 = vsub.f32 %v362, %v386
    %v531 = vsub.f32 %v363, %v387
    %v532 = vsub.f32 %v364, %v388
    %v533 = vsub.f32 %v381, %v405
    %v534 = vsub.f32 %v382, %v406
    %v535 = vsub.f32 %v383, %v407
    %v536 = vsub.f32 %v384, %v408
    %v537 = vsub.f32 %v385, %v409
    %v538 = vsub.f32 %v386, %v410
    %v539 = vsub.f32 %v387, %v411
    %v540 = vsub.f32 %v388, %v412
    %v541 = vsub.f32 %v405, %v429
    %v542 = vsub.f32 %v406, %v430
    %v543 = vsub.f32 %v407, %v431
    %v544 = vsub.f32 %v408, %v432
    %v545 = vsub.f32 %v409, %v433
    %v546 = vsub.f32 %v410, %v434
    %v547 = vsub.f32 %v411, %v435
    %v548 = vsub.f32 %v412, %v436
    %v549 = vsub.f32 %v429, %v453
    %v550 = vsub.f32 %v430, %v454
    %v551 = vsub.f32 %v431, %v455
    %v552 = vsub.f32 %v432, %v456
    %v553 = vsub.f32 %v433, %v457
    %v554 = vsub.f32 %v434, %v458
    %v555 = vsub.f32 %v435, %v459
    %v556 = vsub.f32 %v436, %v460
    %v557 = vmul.f32 %v141, 750.0
    %v558 = vmul.f32 %v142, 750.0
    %v559 = vmul.f32 %v143, 750.0
    %v560 = vmul.f32 %v144, 750.0
    %v561 = vmul.f32 %v145, 750.0
    %v562 = vmul.f32 %v146, 750.0
    %v563 = vmul.f32 %v147, 750.0
    %v564 = vmul.f32 %v148, 750.0
    %v565 = vadd.f32 %v557, 1934.872
    %v566 = vadd.f32 %v558, 1934.872
    %v567 = vadd.f32 %v559, 1934.872
    %v568 = vadd.f32 %v560, 1934.872
    %v569 = vadd.f32 %v561, 1934.872
    %v570 = vadd.f32 %v562, 1934.872
    %v571 = vadd.f32 %v563, 1934.872
    %v572 = vadd.f32 %v564, 1934.872
    %v573 = vadd.f32 %v557, 1933.872
    %v574 = vadd.f32 %v558, 1933.872
    %v575 = vadd.f32 %v559, 1933.872
    %v576 = vadd.f32 %v560, 1933.872
    %v577 = vadd.f32 %v561, 1933.872
    %v578 = vadd.f32 %v562, 1933.872
    %v579 = vadd.f32 %v563, 1933.872
    %v580 = vadd.f32 %v564, 1933.872
    %v581 = vadd.f32 %v557, 1932.872
    %v582 = vadd.f32 %v558, 1932.872
    %v583 = vadd.f32 %v559, 1932.872
    %v584 = vadd.f32 %v560, 1932.872
    %v585 = vadd.f32 %v561, 1932.872
    %v586 = vadd.f32 %v562, 1932.872
    %v587 = vadd.f32 %v563, 1932.872
    %v588 = vadd.f32 %v564, 1932.872
    %v589 = vmul.f32 %v141, 0.6166505
    %v590 = vmul.f32 %v142, 0.6166505
    %v591 = vmul.f32 %v143, 0.6166505
    %v592 = vmul.f32 %v144, 0.6166505
    %v593 = vmul.f32 %v145, 0.6166505
    %v594 = vmul.f32 %v146, 0.6166505
    %v595 = vmul.f32 %v147, 0.6166505
    %v596 = vmul.f32 %v148, 0.6166505
    %v597 = vadd.f32 %v589, 1.5883865
    %v598 = vadd.f32 %v590, 1.5883865
    %v599 = vadd.f32 %v591, 1.5883865
    %v600 = vadd.f32 %v592, 1.5883865
    %v601 = vadd.f32 %v593, 1.5883865
    %v602 = vadd.f32 %v594, 1.5883865
    %v603 = vadd.f32 %v595, 1.5883865
    %v604 = vadd.f32 %v596, 1.5883865
    %v605 = vmul.f32 %v141, 1.8938775
    %v606 = vmul.f32 %v142, 1.8938775
    %v607 = vmul.f32 %v143, 1.8938775
    %v608 = vmul.f32 %v144, 1.8938775
    %v609 = vmul.f32 %v145, 1.8938775
    %v610 = vmul.f32 %v146, 1.8938775
    %v611 = vmul.f32 %v147, 1.8938775
    %v612 = vmul.f32 %v148, 1.8938775
    %v613 = vadd.f32 %v605, 1.8070722
    %v614 = vadd.f32 %v606, 1.8070722
    %v615 = vadd.f32 %v607, 1.8070722
    %v616 = vadd.f32 %v608, 1.8070722
    %v617 = vadd.f32 %v609, 1.8070722
    %v618 = vadd.f32 %v610, 1.8070722
    %v619 = vadd.f32 %v611, 1.8070722
    %v620 = vadd.f32 %v612, 1.8070722
    %v621 = vmul.f32 %v141, 2.3466024
    %v622 = vmul.f32 %v142, 2.3466024
    %v623 = vmul.f32 %v143, 2.3466024
    %v624 = vmul.f32 %v144, 2.3466024
    %v625 = vmul.f32 %v145, 2.3466024
    %v626 = vmul.f32 %v146, 2.3466024
    %v627 = vmul.f32 %v147, 2.3466024
    %v628 = vmul.f32 %v148, 2.3466024
    %v629 = vadd.f32 %v621, 1.0
    %v630 = vadd.f32 %v622, 1.0
    %v631 = vadd.f32 %v623, 1.0
    %v632 = vadd.f32 %v624, 1.0
    %v633 = vadd.f32 %v625, 1.0
    %v634 = vadd.f32 %v626, 1.0
    %v635 = vadd.f32 %v627, 1.0
    %v636 = vadd.f32 %v628, 1.0
    %v637 = vadd.f32 %v621, 3.2651995e-16
    %v638 = vadd.f32 %v622, 3.2651995e-16
    %v639 = vadd.f32 %v623, 3.2651995e-16
    %v640 = vadd.f32 %v624, 3.2651995e-16
    %v641 = vadd.f32 %v625, 3.2651995e-16
    %v642 = vadd.f32 %v626, 3.2651995e-16
    %v643 = vadd.f32 %v627, 3.2651995e-16
    %v644 = vadd.f32 %v628, 3.2651995e-16
    %v645 = vadd.f32 %v605, -0.80707216
    %v646 = vadd.f32 %v606, -0.80707216
    %v647 = vadd.f32 %v607, -0.80707216
    %v648 = vadd.f32 %v608, -0.80707216
    %v649 = vadd.f32 %v609, -0.80707216
    %v650 = vadd.f32 %v610, -0.80707216
    %v651 = vadd.f32 %v611, -0.80707216
    %v652 = vadd.f32 %v612, -0.80707216
    %v653 = vadd.f32 %v589, -0.58838654
    %v654 = vadd.f32 %v590, -0.58838654
    %v655 = vadd.f32 %v591, -0.58838654
    %v656 = vadd.f32 %v592, -0.58838654
    %v657 = vadd.f32 %v593, -0.58838654
    %v658 = vadd.f32 %v594, -0.58838654
    %v659 = vadd.f32 %v595, -0.58838654
    %v660 = vadd.f32 %v596, -0.58838654
    %v661 = vadd.f32 %v557, -1931.872
    %v662 = vadd.f32 %v558, -1931.872
    %v663 = vadd.f32 %v559, -1931.872
    %v664 = vadd.f32 %v560, -1931.872
    %v665 = vadd.f32 %v561, -1931.872
    %v666 = vadd.f32 %v562, -1931.872
    %v667 = vadd.f32 %v563, -1931.872
    %v668 = vadd.f32 %v564, -1931.872
    %v669 = vadd.f32 %v557, -1932.872
    %v670 = vadd.f32 %v558, -1932.872
    %v671 = vadd.f32 %v559, -1932.872
    %v672 = vadd.f32 %v560, -1932.872
    %v673 = vadd.f32 %v561, -1932.872
    %v674 = vadd.f32 %v562, -1932.872
    %v675 = vadd.f32 %v563, -1932.872
    %v676 = vadd.f32 %v564, -1932.872
    %v677 = vadd.f32 %v557, -1933.872
    %v678 = vadd.f32 %v558, -1933.872
    %v679 = vadd.f32 %v559, -1933.872
    %v680 = vadd.f32 %v560, -1933.872
    %v681 = vadd.f32 %v561, -1933.872
    %v682 = vadd.f32 %v562, -1933.872
    %v683 = vadd.f32 %v563, -1933.872
    %v684 = vadd.f32 %v564, -1933.872
    %v685 = vsub.f32 1.0, %v573
    %v686 = vsub.f32 1.0, %v574
    %v687 = vsub.f32 1.0, %v575
    %v688 = vsub.f32 1.0, %v576
    %v689 = vsub.f32 1.0, %v577
    %v690 = vsub.f32 1.0, %v578
    %v691 = vsub.f32 1.0, %v579
    %v692 = vsub.f32 1.0, %v580
    %v693 = vsub.f32 1.0, %v581
    %v694 = vsub.f32 1.0, %v582
    %v695 = vsub.f32 1.0, %v583
    %v696 = vsub.f32 1.0, %v584
    %v697 = vsub.f32 1.0, %v585
    %v698 = vsub.f32 1.0, %v586
    %v699 = vsub.f32 1.0, %v587
    %v700 = vsub.f32 1.0, %v588
    %v701 = vsub.f32 1.0, %v597
    %v702 = vsub.f32 1.0, %v598
    %v703 = vsub.f32 1.0, %v599
    %v704 = vsub.f32 1.0, %v600
    %v705 = vsub.f32 1.0, %v601
    %v706 = vsub.f32 1.0, %v602
    %v707 = vsub.f32 1.0, %v603
    %v708 = vsub.f32 1.0, %v604
    %v709 = vsub.f32 1.0, %v613
    %v710 = vsub.f32 1.0, %v614
    %v711 = vsub.f32 1.0, %v615
    %v712 = vsub.f32 1.0, %v616
    %v713 = vsub.f32 1.0, %v617
    %v714 = vsub.f32 1.0, %v618
    %v715 = vsub.f32 1.0, %v619
    %v716 = vsub.f32 1.0, %v620
    %v717 = vsub.f32 1.0, %v629
    %v718 = vsub.f32 1.0, %v630
    %v719 = vsub.f32 1.0, %v631
    %v720 = vsub.f32 1.0, %v632
    %v721 = vsub.f32 1.0, %v633
    %v722 = vsub.f32 1.0, %v634
    %v723 = vsub.f32 1.0, %v635
    %v724 = vsub.f32 1.0, %v636
    %v725 = vsub.f32 1.0, %v637
    %v726 = vsub.f32 1.0, %v638
    %v727 = vsub.f32 1.0, %v639
    %v728 = vsub.f32 1.0, %v640
    %v729 = vsub.f32 1.0, %v641
    %v730 = vsub.f32 1.0, %v642
    %v731 = vsub.f32 1.0, %v643
    %v732 = vsub.f32 1.0, %v644
    %v733 = vsub.f32 1.0, %v645
    %v734 = vsub.f32 1.0, %v646
    %v735 = vsub.f32 1.0, %v647
    %v736 = vsub.f32 1.0, %v648
    %v737 = vsub.f32 1.0, %v649
    %v738 = vsub.f32 1.0, %v650
    %v739 = vsub.f32 1.0, %v651
    %v740 = vsub.f32 1.0, %v652
    %v741 = vsub.f32 1.0, %v653
    %v742 = vsub.f32 1.0, %v654
    %v743 = vsub.f32 1.0, %v655
    %v744 = vsub.f32 1.0, %v656
    %v745 = vsub.f32 1.0, %v657
    %v746 = vsub.f32 1.0, %v658
    %v747 = vsub.f32 1.0, %v659
    %v748 = vsub.f32 1.0, %v660
    %v749 = vsub.f32 1.0, %v661
    %v750 = vsub.f32 1.0, %v662
    %v751 = vsub.f32 1.0, %v663
    %v752 = vsub.f32 1.0, %v664
    %v753 = vsub.f32 1.0, %v665
    %v754 = vsub.f32 1.0, %v666
    %v755 = vsub.f32 1.0, %v667
    %v756 = vsub.f32 1.0, %v668
    %v757 = vsub.f32 1.0, %v669
    %v758 = vsub.f32 1.0, %v670
    %v759 = vsub.f32 1.0, %v671
    %v760 = vsub.f32 1.0, %v672
    %v761 = vsub.f32 1.0, %v673
    %v762 = vsub.f32 1.0, %v674
    %v763 = vsub.f32 1.0, %v675
    %v764 = vsub.f32 1.0, %v676
    %v765 = vsub.f32 1.0, %v677
    %v766 = vsub.f32 1.0, %v678
    %v767 = vsub.f32 1.0, %v679
    %v768 = vsub.f32 1.0, %v680
    %v769 = vsub.f32 1.0, %v681
    %v770 = vsub.f32 1.0, %v682
    %v771 = vsub.f32 1.0, %v683
    %v772 = vsub.f32 1.0, %v684
    %v773 = vmul.f32 %v565, %v461
    %v774 = vmul.f32 %v566, %v462
    %v775 = vmul.f32 %v567, %v463
    %v776 = vmul.f32 %v568, %v464
    %v777 = vmul.f32 %v569, %v465
    %v778 = vmul.f32 %v570, %v466
    %v779 = vmul.f32 %v571, %v467
    %v780 = vmul.f32 %v572, %v468
    %v781 = vmul.f32 %v685, %v469
    %v782 = vmul.f32 %v686, %v470
    %v783 = vmul.f32 %v687, %v471
    %v784 = vmul.f32 %v688, %v472
    %v785 = vmul.f32 %v689, %v473
    %v786 = vmul.f32 %v690, %v474
    %v787 = vmul.f32 %v691, %v475
    %v788 = vmul.f32 %v692, %v476
    %v789 = vadd.f32 %v773, %v781
    %v790 = vadd.f32 %v774, %v782
    %v791 = vadd.f32 %v775, %v783
    %v792 = vadd.f32 %v776, %v784
    %v793 = vadd.f32 %v777, %v785
    %v794 = vadd.f32 %v778, %v786
    %v795 = vadd.f32 %v779, %v787
    %v796 = vadd.f32 %v780, %v788
    %v797 = vmul.f32 %v573, %v469
    %v798 = vmul.f32 %v574, %v470
    %v799 = vmul.f32 %v575, %v471
    %v800 = vmul.f32 %v576, %v472
    %v801 = vmul.f32 %v577, %v473
    %v802 = vmul.f32 %v578, %v474
    %v803 = vmul.f32 %v579, %v475
    %v804 = vmul.f32 %v580, %v476
    %v805 = vmul.f32 %v693, %v477
    %v806 = vmul.f32 %v694, %v478
    %v807 = vmul.f32 %v695, %v479
    %v808 = vmul.f32 %v696, %v480
    %v809 = vmul.f32 %v697, %v481
    %v810 = vmul.f32 %v698, %v482
    %v811 = vmul.f32 %v699, %v483
    %v812 = vmul.f32 %v700, %v484
    %v813 = vadd.f32 %v797, %v805
    %v814 = vadd.f32 %v798, %v806
    %v815 = vadd.f32 %v799, %v807
    %v816 = vadd.f32 %v800, %v808
    %v817 = vadd.f32 %v801, %v809
    %v818 = vadd.f32 %v802, %v810
    %v819 = vadd.f32 %v803, %v811
    %v820 = vadd.f32 %v804, %v812
    %v821 = vmul.f32 %v581, %v477
    %v822 = vmul.f32 %v582, %v478
    %v823 = vmul.f32 %v583, %v479
    %v824 = vmul.f32 %v584, %v480
    %v825 = vmul.f32 %v585, %v481
    %v826 = vmul.f32 %v586, %v482
    %v827 = vmul.f32 %v587, %v483
    %v828 = vmul.f32 %v588, %v484
    %v829 = vmul.f32 %v701, %v485
    %v830 = vmul.f32 %v702, %v486
    %v831 = vmul.f32 %v703, %v487
    %v832 = vmul.f32 %v704, %v488
    %v833 = vmul.f32 %v705, %v489
    %v834 = vmul.f32 %v706, %v490
    %v835 = vmul.f32 %v707, %v491
    %v836 = vmul.f32 %v708, %v492
    %v837 = vadd.f32 %v821, %v829
    %v838 = vadd.f32 %v822, %v830
    %v839 = vadd.f32 %v823, %v831
    %v840 = vadd.f32 %v824, %v832
    %v841 = vadd.f32 %v825, %v833
    %v842 = vadd.f32 %v826, %v834
    %v843 = vadd.f32 %v827, %v835
    %v844 = vadd.f32 %v828, %v836
    %v845 = vmul.f32 %v597, %v485
    %v846 = vmul.f32 %v598, %v486
    %v847 = vmul.f32 %v599, %v487
    %v848 = vmul.f32 %v600, %v488
    %v849 = vmul.f32 %v601, %v489
    %v850 = vmul.f32 %v602, %v490
    %v851 = vmul.f32 %v603, %v491
    %v852 = vmul.f32 %v604, %v492
    %v853 = vmul.f32 %v709, %v493
    %v854 = vmul.f32 %v710, %v494
    %v855 = vmul.f32 %v711, %v495
    %v856 = vmul.f32 %v712, %v496
    %v857 = vmul.f32 %v713, %v497
    %v858 = vmul.f32 %v714, %v498
    %v859 = vmul.f32 %v715, %v499
    %v860 = vmul.f32 %v716, %v500
    %v861 = vadd.f32 %v845, %v853
    %v862 = vadd.f32 %v846, %v854
    %v863 = vadd.f32 %v847, %v855
    %v864 = vadd.f32 %v848, %v856
    %v865 = vadd.f32 %v849, %v857
    %v866 = vadd.f32 %v850, %v858
    %v867 = vadd.f32 %v851, %v859
    %v868 = vadd.f32 %v852, %v860
    %v869 = vmul.f32 %v613, %v493
    %v870 = vmul.f32 %v614, %v494
    %v871 = vmul.f32 %v615, %v495
    %v872 = vmul.f32 %v616, %v496
    %v873 = vmul.f32 %v617, %v497
    %v874 = vmul.f32 %v618, %v498
    %v875 = vmul.f32 %v619, %v499
    %v876 = vmul.f32 %v620, %v500
    %v877 = vmul.f32 %v717, %v501
    %v878 = vmul.f32 %v718, %v502
    %v879 = vmul.f32 %v719, %v503
    %v880 = vmul.f32 %v720, %v504
    %v881 = vmul.f32 %v721, %v505
    %v882 = vmul.f32 %v722, %v506
    %v883 = vmul.f32 %v723, %v507
    %v884 = vmul.f32 %v724, %v508
    %v885 = vadd.f32 %v869, %v877
    %v886 = vadd.f32 %v870, %v878
    %v887 = vadd.f32 %v871, %v879
    %v888 = vadd.f32 %v872, %v880
    %v889 = vadd.f32 %v873, %v881
    %v890 = vadd.f32 %v874, %v882
    %v891 = vadd.f32 %v875, %v883
    %v892 = vadd.f32 %v876, %v884
    %v893 = vmul.f32 %v629, %v501
    %v894 = vmul.f32 %v630, %v502
    %v895 = vmul.f32 %v631, %v503
    %v896 = vmul.f32 %v632, %v504
    %v897 = vmul.f32 %v633, %v505
    %v898 = vmul.f32 %v634, %v506
    %v899 = vmul.f32 %v635, %v507
    %v900 = vmul.f32 %v636, %v508
    %v901 = vmul.f32 %v725, %v509
    %v902 = vmul.f32 %v726, %v510
    %v903 = vmul.f32 %v727, %v511
    %v904 = vmul.f32 %v728, %v512
    %v905 = vmul.f32 %v729, %v513
    %v906 = vmul.f32 %v730, %v514
    %v907 = vmul.f32 %v731, %v515
    %v908 = vmul.f32 %v732, %v516
    %v909 = vadd.f32 %v893, %v901
    %v910 = vadd.f32 %v894, %v902
    %v911 = vadd.f32 %v895, %v903
    %v912 = vadd.f32 %v896, %v904
    %v913 = vadd.f32 %v897, %v905
    %v914 = vadd.f32 %v898, %v906
    %v915 = vadd.f32 %v899, %v907
    %v916 = vadd.f32 %v900, %v908
    %v917 = vmul.f32 %v637, %v509
    %v918 = vmul.f32 %v638, %v510
    %v919 = vmul.f32 %v639, %v511
    %v920 = vmul.f32 %v640, %v512
    %v921 = vmul.f32 %v641, %v513
    %v922 = vmul.f32 %v642, %v514
    %v923 = vmul.f32 %v643, %v515
    %v924 = vmul.f32 %v644, %v516
    %v925 = vmul.f32 %v733, %v517
    %v926 = vmul.f32 %v734, %v518
    %v927 = vmul.f32 %v735, %v519
    %v928 = vmul.f32 %v736, %v520
    %v929 = vmul.f32 %v737, %v521
    %v930 = vmul.f32 %v738, %v522
    %v931 = vmul.f32 %v739, %v523
    %v932 = vmul.f32 %v740, %v524
    %v933 = vadd.f32 %v917, %v925
    %v934 = vadd.f32 %v918, %v926
    %v935 = vadd.f32 %v919, %v927
    %v936 = vadd.f32 %v920, %v928
    %v937 = vadd.f32 %v921, %v929
    %v938 = vadd.f32 %v922, %v930
    %v939 = vadd.f32 %v923, %v931
    %v940 = vadd.f32 %v924, %v932
    %v941 = vmul.f32 %v645, %v517
    %v942 = vmul.f32 %v646, %v518
    %v943 = vmul.f32 %v647, %v519
    %v944 = vmul.f32 %v648, %v520
    %v945 = vmul.f32 %v649, %v521
    %v946 = vmul.f32 %v650, %v522
    %v947 = vmul.f32 %v651, %v523
    %v948 = vmul.f32 %v652, %v524
    %v949 = vmul.f32 %v741, %v525
    %v950 = vmul.f32 %v742, %v526
    %v951 = vmul.f32 %v743, %v527
    %v952 = vmul.f32 %v744, %v528
    %v953 = vmul.f32 %v745, %v529
    %v954 = vmul.f32 %v746, %v530
    %v955 = vmul.f32 %v747, %v531
    %v956 = vmul.f32 %v748, %v532
    %v957 = vadd.f32 %v941, %v949
    %v958 = vadd.f32 %v942, %v950
    %v959 = vadd.f32 %v943, %v951
    %v960 = vadd.f32 %v944, %v952
    %v961 = vadd.f32 %v945, %v953
    %v962 = vadd.f32 %v946, %v954
    %v963 = vadd.f32 %v947, %v955
    %v964 = vadd.f32 %v948, %v956
    %v965 = vmul.f32 %v653, %v525
    %v966 = vmul.f32 %v654, %v526
    %v967 = vmul.f32 %v655, %v527
    %v968 = vmul.f32 %v656, %v528
    %v969 = vmul.f32 %v657, %v529
    %v970 = vmul.f32 %v658, %v530
    %v971 = vmul.f32 %v659, %v531
    %v972 = vmul.f32 %v660, %v532
    %v973 = vmul.f32 %v749, %v533
    %v974 = vmul.f32 %v750, %v534
    %v975 = vmul.f32 %v751, %v535
    %v976 = vmul.f32 %v752, %v536
    %v977 = vmul.f32 %v753, %v537
    %v978 = vmul.f32 %v754, %v538
    %v979 = vmul.f32 %v755, %v539
    %v980 = vmul.f32 %v756, %v540
    %v981 = vadd.f32 %v965, %v973
    %v982 = vadd.f32 %v966, %v974
    %v983 = vadd.f32 %v967, %v975
    %v984 = vadd.f32 %v968, %v976
    %v985 = vadd.f32 %v969, %v977
    %v986 = vadd.f32 %v970, %v978
    %v987 = vadd.f32 %v971, %v979
    %v988 = vadd.f32 %v972, %v980
    %v989 = vmul.f32 %v661, %v533
    %v990 = vmul.f32 %v662, %v534
    %v991 = vmul.f32 %v663, %v535
    %v992 = vmul.f32 %v664, %v536
    %v993 = vmul.f32 %v665, %v537
    %v994 = vmul.f32 %v666, %v538
    %v995 = vmul.f32 %v667, %v539
    %v996 = vmul.f32 %v668, %v540
    %v997 = vmul.f32 %v757, %v541
    %v998 = vmul.f32 %v758, %v542
    %v999 = vmul.f32 %v759, %v543
    %v1000 = vmul.f32 %v760, %v544
    %v1001 = vmul.f32 %v761, %v545
    %v1002 = vmul.f32 %v762, %v546
    %v1003 = vmul.f32 %v763, %v547
    %v1004 = vmul.f32 %v764, %v548
    %v1005 = vadd.f32 %v989, %v997
    %v1006 = vadd.f32 %v990, %v998
    %v1007 = vadd.f32 %v991, %v999
    %v1008 = vadd.f32 %v992, %v1000
    %v1009 = vadd.f32 %v993, %v1001
    %v1010 = vadd.f32 %v994, %v1002
    %v1011 = vadd.f32 %v995, %v1003
    %v1012 = vadd.f32 %v996, %v1004
    %v1013 = vmul.f32 %v669, %v541
    %v1014 = vmul.f32 %v670, %v542
    %v1015 = vmul.f32 %v671, %v543
    %v1016 = vmul.f32 %v672, %v544
    %v1017 = vmul.f32 %v673, %v545
    %v1018 = vmul.f32 %v674, %v546
    %v1019 = vmul.f32 %v675, %v547
    %v1020 = vmul.f32 %v676, %v548
    %v1021 = vmul.f32 %v765, %v549
    %v1022 = vmul.f32 %v766, %v550
    %v1023 = vmul.f32 %v767, %v551
    %v1024 = vmul.f32 %v768, %v552
    %v1025 = vmul.f32 %v769, %v553
    %v1026 = vmul.f32 %v770, %v554
    %v1027 = vmul.f32 %v771, %v555
    %v1028 = vmul.f32 %v772, %v556
    %v1029 = vadd.f32 %v1013, %v1021
    %v1030 = vadd.f32 %v1014, %v1022
    %v1031 = vadd.f32 %v1015, %v1023
    %v1032 = vadd.f32 %v1016, %v1024
    %v1033 = vadd.f32 %v1017, %v1025
    %v1034 = vadd.f32 %v1018, %v1026
    %v1035 = vadd.f32 %v1019, %v1027
    %v1036 = vadd.f32 %v1020, %v1028
    %v1037 = vmul.f32 %v141, 375.0
    %v1038 = vmul.f32 %v142, 375.0
    %v1039 = vmul.f32 %v143, 375.0
    %v1040 = vmul.f32 %v144, 375.0
    %v1041 = vmul.f32 %v145, 375.0
    %v1042 = vmul.f32 %v146, 375.0
    %v1043 = vmul.f32 %v147, 375.0
    %v1044 = vmul.f32 %v148, 375.0
    %v1045 = vadd.f32 %v1037, 967.436
    %v1046 = vadd.f32 %v1038, 967.436
    %v1047 = vadd.f32 %v1039, 967.436
    %v1048 = vadd.f32 %v1040, 967.436
    %v1049 = vadd.f32 %v1041, 967.436
    %v1050 = vadd.f32 %v1042, 967.436
    %v1051 = vadd.f32 %v1043, 967.436
    %v1052 = vadd.f32 %v1044, 967.436
    %v1053 = vadd.f32 %v1037, 966.936
    %v1054 = vadd.f32 %v1038, 966.936
    %v1055 = vadd.f32 %v1039, 966.936
    %v1056 = vadd.f32 %v1040, 966.936
    %v1057 = vadd.f32 %v1041, 966.936
    %v1058 = vadd.f32 %v1042, 966.936
    %v1059 = vadd.f32 %v1043, 966.936
    %v1060 = vadd.f32 %v1044, 966.936
    %v1061 = vmul.f32 %v141, 0.61614394
    %v1062 = vmul.f32 %v142, 0.61614394
    %v1063 = vmul.f32 %v143, 0.61614394
    %v1064 = vmul.f32 %v144, 0.61614394
    %v1065 = vmul.f32 %v145, 0.61614394
    %v1066 = vmul.f32 %v146, 0.61614394
    %v1067 = vmul.f32 %v147, 0.61614394
    %v1068 = vmul.f32 %v148, 0.61614394
    %v1069 = vadd.f32 %v1061, 1.5879031
    %v1070 = vadd.f32 %v1062, 1.5879031
    %v1071 = vadd.f32 %v1063, 1.5879031
    %v1072 = vadd.f32 %v1064, 1.5879031
    %v1073 = vadd.f32 %v1065, 1.5879031
    %v1074 = vadd.f32 %v1066, 1.5879031
    %v1075 = vadd.f32 %v1067, 1.5879031
    %v1076 = vadd.f32 %v1068, 1.5879031
    %v1077 = vmul.f32 %v141, 0.46518523
    %v1078 = vmul.f32 %v142, 0.46518523
    %v1079 = vmul.f32 %v143, 0.46518523
    %v1080 = vmul.f32 %v144, 0.46518523
    %v1081 = vmul.f32 %v145, 0.46518523
    %v1082 = vmul.f32 %v146, 0.46518523
    %v1083 = vmul.f32 %v147, 0.46518523
    %v1084 = vmul.f32 %v148, 0.46518523
    %v1085 = vadd.f32 %v1077, 1.1982378
    %v1086 = vadd.f32 %v1078, 1.1982378
    %v1087 = vadd.f32 %v1079, 1.1982378
    %v1088 = vadd.f32 %v1080, 1.1982378
    %v1089 = vadd.f32 %v1081, 1.1982378
    %v1090 = vadd.f32 %v1082, 1.1982378
    %v1091 = vadd.f32 %v1083, 1.1982378
    %v1092 = vadd.f32 %v1084, 1.1982378
    %v1093 = vmul.f32 %v141, 1.0480365
    %v1094 = vmul.f32 %v142, 1.0480365
    %v1095 = vmul.f32 %v143, 1.0480365
    %v1096 = vmul.f32 %v144, 1.0480365
    %v1097 = vmul.f32 %v145, 1.0480365
    %v1098 = vmul.f32 %v146, 1.0480365
    %v1099 = vmul.f32 %v147, 1.0480365
    %v1100 = vmul.f32 %v148, 1.0480365
    %v1101 = vadd.f32 %v1093, 1.0
    %v1102 = vadd.f32 %v1094, 1.0
    %v1103 = vadd.f32 %v1095, 1.0
    %v1104 = vadd.f32 %v1096, 1.0
    %v1105 = vadd.f32 %v1097, 1.0
    %v1106 = vadd.f32 %v1098, 1.0
    %v1107 = vadd.f32 %v1099, 1.0
    %v1108 = vadd.f32 %v1100, 1.0
    %v1109 = vmul.f32 %v141, 1.1733012
    %v1110 = vmul.f32 %v142, 1.1733012
    %v1111 = vmul.f32 %v143, 1.1733012
    %v1112 = vmul.f32 %v144, 1.1733012
    %v1113 = vmul.f32 %v145, 1.1733012
    %v1114 = vmul.f32 %v146, 1.1733012
    %v1115 = vmul.f32 %v147, 1.1733012
    %v1116 = vmul.f32 %v148, 1.1733012
    %v1117 = vadd.f32 %v1109, 0.5
    %v1118 = vadd.f32 %v1110, 0.5
    %v1119 = vadd.f32 %v1111, 0.5
    %v1120 = vadd.f32 %v1112, 0.5
    %v1121 = vadd.f32 %v1113, 0.5
    %v1122 = vadd.f32 %v1114, 0.5
    %v1123 = vadd.f32 %v1115, 0.5
    %v1124 = vadd.f32 %v1116, 0.5
    %v1125 = vadd.f32 %v1093, 1.458299e-16
    %v1126 = vadd.f32 %v1094, 1.458299e-16
    %v1127 = vadd.f32 %v1095, 1.458299e-16
    %v1128 = vadd.f32 %v1096, 1.458299e-16
    %v1129 = vadd.f32 %v1097, 1.458299e-16
    %v1130 = vadd.f32 %v1098, 1.458299e-16
    %v1131 = vadd.f32 %v1099, 1.458299e-16
    %v1132 = vadd.f32 %v1100, 1.458299e-16
    %v1133 = vadd.f32 %v1077, -0.19823776
    %v1134 = vadd.f32 %v1078, -0.19823776
    %v1135 = vadd.f32 %v1079, -0.19823776
    %v1136 = vadd.f32 %v1080, -0.19823776
    %v1137 = vadd.f32 %v1081, -0.19823776
    %v1138 = vadd.f32 %v1082, -0.19823776
    %v1139 = vadd.f32 %v1083, -0.19823776
    %v1140 = vadd.f32 %v1084, -0.19823776
    %v1141 = vadd.f32 %v1061, -0.58790314
    %v1142 = vadd.f32 %v1062, -0.58790314
    %v1143 = vadd.f32 %v1063, -0.58790314
    %v1144 = vadd.f32 %v1064, -0.58790314
    %v1145 = vadd.f32 %v1065, -0.58790314
    %v1146 = vadd.f32 %v1066, -0.58790314
    %v1147 = vadd.f32 %v1067, -0.58790314
    %v1148 = vadd.f32 %v1068, -0.58790314
    %v1149 = vadd.f32 %v1037, -965.936
    %v1150 = vadd.f32 %v1038, -965.936
    %v1151 = vadd.f32 %v1039, -965.936
    %v1152 = vadd.f32 %v1040, -965.936
    %v1153 = vadd.f32 %v1041, -965.936
    %v1154 = vadd.f32 %v1042, -965.936
    %v1155 = vadd.f32 %v1043, -965.936
    %v1156 = vadd.f32 %v1044, -965.936
    %v1157 = vadd.f32 %v1037, -966.436
    %v1158 = vadd.f32 %v1038, -966.436
    %v1159 = vadd.f32 %v1039, -966.436
    %v1160 = vadd.f32 %v1040, -966.436
    %v1161 = vadd.f32 %v1041, -966.436
    %v1162 = vadd.f32 %v1042, -966.436
    %v1163 = vadd.f32 %v1043, -966.436
    %v1164 = vadd.f32 %v1044, -966.436
    %v1165 = vsub.f32 1.0, %v1053
    %v1166 = vsub.f32 1.0, %v1054
    %v1167 = vsub.f32 1.0, %v1055
    %v1168 = vsub.f32 1.0, %v1056
    %v1169 = vsub.f32 1.0, %v1057
    %v1170 = vsub.f32 1.0, %v1058
    %v1171 = vsub.f32 1.0, %v1059
    %v1172 = vsub.f32 1.0, %v1060
    %v1173 = vsub.f32 1.0, %v1069
    %v1174 = vsub.f32 1.0, %v1070
    %v1175 = vsub.f32 1.0, %v1071
    %v1176 = vsub.f32 1.0, %v1072
    %v1177 = vsub.f32 1.0, %v1073
    %v1178 = vsub.f32 1.0, %v1074
    %v1179 = vsub.f32 1.0, %v1075
    %v1180 = vsub.f32 1.0, %v1076
    %v1181 = vsub.f32 1.0, %v1085
    %v1182 = vsub.f32 1.0, %v1086
    %v1183 = vsub.f32 1.0, %v1087
    %v1184 = vsub.f32 1.0, %v1088
    %v1185 = vsub.f32 1.0, %v1089
    %v1186 = vsub.f32 1.0, %v1090
    %v1187 = vsub.f32 1.0, %v1091
    %v1188 = vsub.f32 1.0, %v1092
    %v1189 = vsub.f32 1.0, %v1101
    %v1190 = vsub.f32 1.0, %v1102
    %v1191 = vsub.f32 1.0, %v1103
    %v1192 = vsub.f32 1.0, %v1104
    %v1193 = vsub.f32 1.0, %v1105
    %v1194 = vsub.f32 1.0, %v1106
    %v1195 = vsub.f32 1.0, %v1107
    %v1196 = vsub.f32 1.0, %v1108
    %v1197 = vsub.f32 1.0, %v1117
    %v1198 = vsub.f32 1.0, %v1118
    %v1199 = vsub.f32 1.0, %v1119
    %v1200 = vsub.f32 1.0, %v1120
    %v1201 = vsub.f32 1.0, %v1121
    %v1202 = vsub.f32 1.0, %v1122
    %v1203 = vsub.f32 1.0, %v1123
    %v1204 = vsub.f32 1.0, %v1124
    %v1205 = vsub.f32 1.0, %v1125
    %v1206 = vsub.f32 1.0, %v1126
    %v1207 = vsub.f32 1.0, %v1127
    %v1208 = vsub.f32 1.0, %v1128
    %v1209 = vsub.f32 1.0, %v1129
    %v1210 = vsub.f32 1.0, %v1130
    %v1211 = vsub.f32 1.0, %v1131
    %v1212 = vsub.f32 1.0, %v1132
    %v1213 = vsub.f32 1.0, %v1133
    %v1214 = vsub.f32 1.0, %v1134
    %v1215 = vsub.f32 1.0, %v1135
    %v1216 = vsub.f32 1.0, %v1136
    %v1217 = vsub.f32 1.0, %v1137
    %v1218 = vsub.f32 1.0, %v1138
    %v1219 = vsub.f32 1.0, %v1139
    %v1220 = vsub.f32 1.0, %v1140
    %v1221 = vsub.f32 1.0, %v1141
    %v1222 = vsub.f32 1.0, %v1142
    %v1223 = vsub.f32 1.0, %v1143
    %v1224 = vsub.f32 1.0, %v1144
    %v1225 = vsub.f32 1.0, %v1145
    %v1226 = vsub.f32 1.0, %v1146
    %v1227 = vsub.f32 1.0, %v1147
    %v1228 = vsub.f32 1.0, %v1148
    %v1229 = vsub.f32 1.0, %v1149
    %v1230 = vsub.f32 1.0, %v1150
    %v1231 = vsub.f32 1.0, %v1151
    %v1232 = vsub.f32 1.0, %v1152
    %v1233 = vsub.f32 1.0, %v1153
    %v1234 = vsub.f32 1.0, %v1154
    %v1235 = vsub.f32 1.0, %v1155
    %v1236 = vsub.f32 1.0, %v1156
    %v1237 = vsub.f32 1.0, %v1157
    %v1238 = vsub.f32 1.0, %v1158
    %v1239 = vsub.f32 1.0, %v1159
    %v1240 = vsub.f32 1.0, %v1160
    %v1241 = vsub.f32 1.0, %v1161
    %v1242 = vsub.f32 1.0, %v1162
    %v1243 = vsub.f32 1.0, %v1163
    %v1244 = vsub.f32 1.0, %v1164
    %v1245 = vmul.f32 %v1045, %v789
    %v1246 = vmul.f32 %v1046, %v790
    %v1247 = vmul.f32 %v1047, %v791
    %v1248 = vmul.f32 %v1048, %v792
    %v1249 = vmul.f32 %v1049, %v793
    %v1250 = vmul.f32 %v1050, %v794
    %v1251 = vmul.f32 %v1051, %v795
    %v1252 = vmul.f32 %v1052, %v796
    %v1253 = vmul.f32 %v1165, %v813
    %v1254 = vmul.f32 %v1166, %v814
    %v1255 = vmul.f32 %v1167, %v815
    %v1256 = vmul.f32 %v1168, %v816
    %v1257 = vmul.f32 %v1169, %v817
    %v1258 = vmul.f32 %v1170, %v818
    %v1259 = vmul.f32 %v1171, %v819
    %v1260 = vmul.f32 %v1172, %v820
    %v1261 = vadd.f32 %v1245, %v1253
    %v1262 = vadd.f32 %v1246, %v1254
    %v1263 = vadd.f32 %v1247, %v1255
    %v1264 = vadd.f32 %v1248, %v1256
    %v1265 = vadd.f32 %v1249, %v1257
    %v1266 = vadd.f32 %v1250, %v1258
    %v1267 = vadd.f32 %v1251, %v1259
    %v1268 = vadd.f32 %v1252, %v1260
    %v1269 = vmul.f32 %v1053, %v813
    %v1270 = vmul.f32 %v1054, %v814
    %v1271 = vmul.f32 %v1055, %v815
    %v1272 = vmul.f32 %v1056, %v816
    %v1273 = vmul.f32 %v1057, %v817
    %v1274 = vmul.f32 %v1058, %v818
    %v1275 = vmul.f32 %v1059, %v819
    %v1276 = vmul.f32 %v1060, %v820
    %v1277 = vmul.f32 %v1173, %v837
    %v1278 = vmul.f32 %v1174, %v838
    %v1279 = vmul.f32 %v1175, %v839
    %v1280 = vmul.f32 %v1176, %v840
    %v1281 = vmul.f32 %v1177, %v841
    %v1282 = vmul.f32 %v1178, %v842
    %v1283 = vmul.f32 %v1179, %v843
    %v1284 = vmul.f32 %v1180, %v844
    %v1285 = vadd.f32 %v1269, %v1277
    %v1286 = vadd.f32 %v1270, %v1278
    %v1287 = vadd.f32 %v1271, %v1279
    %v1288 = vadd.f32 %v1272, %v1280
    %v1289 = vadd.f32 %v1273, %v1281
    %v1290 = vadd.f32 %v1274, %v1282
    %v1291 = vadd.f32 %v1275, %v1283
    %v1292 = vadd.f32 %v1276, %v1284
    %v1293 = vmul.f32 %v1069, %v837
    %v1294 = vmul.f32 %v1070, %v838
    %v1295 = vmul.f32 %v1071, %v839
    %v1296 = vmul.f32 %v1072, %v840
    %v1297 = vmul.f32 %v1073, %v841
    %v1298 = vmul.f32 %v1074, %v842
    %v1299 = vmul.f32 %v1075, %v843
    %v1300 = vmul.f32 %v1076, %v844
    %v1301 = vmul.f32 %v1181, %v861
    %v1302 = vmul.f32 %v1182, %v862
    %v1303 = vmul.f32 %v1183, %v863
    %v1304 = vmul.f32 %v1184, %v864
    %v1305 = vmul.f32 %v1185, %v865
    %v1306 = vmul.f32 %v1186, %v866
    %v1307 = vmul.f32 %v1187, %v867
    %v1308 = vmul.f32 %v1188, %v868
    %v1309 = vadd.f32 %v1293, %v1301
    %v1310 = vadd.f32 %v1294, %v1302
    %v1311 = vadd.f32 %v1295, %v1303
    %v1312 = vadd.f32 %v1296, %v1304
    %v1313 = vadd.f32 %v1297, %v1305
    %v1314 = vadd.f32 %v1298, %v1306
    %v1315 = vadd.f32 %v1299, %v1307
    %v1316 = vadd.f32 %v1300, %v1308
    %v1317 = vmul.f32 %v1085, %v861
    %v1318 = vmul.f32 %v1086, %v862
    %v1319 = vmul.f32 %v1087, %v863
    %v1320 = vmul.f32 %v1088, %v864
    %v1321 = vmul.f32 %v1089, %v865
    %v1322 = vmul.f32 %v1090, %v866
    %v1323 = vmul.f32 %v1091, %v867
    %v1324 = vmul.f32 %v1092, %v868
    %v1325 = vmul.f32 %v1189, %v885
    %v1326 = vmul.f32 %v1190, %v886
    %v1327 = vmul.f32 %v1191, %v887
    %v1328 = vmul.f32 %v1192, %v888
    %v1329 = vmul.f32 %v1193, %v889
    %v1330 = vmul.f32 %v1194, %v890
    %v1331 = vmul.f32 %v1195, %v891
    %v1332 = vmul.f32 %v1196, %v892
    %v1333 = vadd.f32 %v1317, %v1325
    %v1334 = vadd.f32 %v1318, %v1326
    %v1335 = vadd.f32 %v1319, %v1327
    %v1336 = vadd.f32 %v1320, %v1328
    %v1337 = vadd.f32 %v1321, %v1329
    %v1338 = vadd.f32 %v1322, %v1330
    %v1339 = vadd.f32 %v1323, %v1331
    %v1340 = vadd.f32 %v1324, %v1332
    %v1341 = vmul.f32 %v1101, %v885
    %v1342 = vmul.f32 %v1102, %v886
    %v1343 = vmul.f32 %v1103, %v887
    %v1344 = vmul.f32 %v1104, %v888
    %v1345 = vmul.f32 %v1105, %v889
    %v1346 = vmul.f32 %v1106, %v890
    %v1347 = vmul.f32 %v1107, %v891
    %v1348 = vmul.f32 %v1108, %v892
    %v1349 = vmul.f32 %v1197, %v909
    %v1350 = vmul.f32 %v1198, %v910
    %v1351 = vmul.f32 %v1199, %v911
    %v1352 = vmul.f32 %v1200, %v912
    %v1353 = vmul.f32 %v1201, %v913
    %v1354 = vmul.f32 %v1202, %v914
    %v1355 = vmul.f32 %v1203, %v915
    %v1356 = vmul.f32 %v1204, %v916
    %v1357 = vadd.f32 %v1341, %v1349
    %v1358 = vadd.f32 %v1342, %v1350
    %v1359 = vadd.f32 %v1343, %v1351
    %v1360 = vadd.f32 %v1344, %v1352
    %v1361 = vadd.f32 %v1345, %v1353
    %v1362 = vadd.f32 %v1346, %v1354
    %v1363 = vadd.f32 %v1347, %v1355
    %v1364 = vadd.f32 %v1348, %v1356
    %v1365 = vmul.f32 %v1117, %v909
    %v1366 = vmul.f32 %v1118, %v910
    %v1367 = vmul.f32 %v1119, %v911
    %v1368 = vmul.f32 %v1120, %v912
    %v1369 = vmul.f32 %v1121, %v913
    %v1370 = vmul.f32 %v1122, %v914
    %v1371 = vmul.f32 %v1123, %v915
    %v1372 = vmul.f32 %v1124, %v916
    %v1373 = vmul.f32 %v1205, %v933
    %v1374 = vmul.f32 %v1206, %v934
    %v1375 = vmul.f32 %v1207, %v935
    %v1376 = vmul.f32 %v1208, %v936
    %v1377 = vmul.f32 %v1209, %v937
    %v1378 = vmul.f32 %v1210, %v938
    %v1379 = vmul.f32 %v1211, %v939
    %v1380 = vmul.f32 %v1212, %v940
    %v1381 = vadd.f32 %v1365, %v1373
    %v1382 = vadd.f32 %v1366, %v1374
    %v1383 = vadd.f32 %v1367, %v1375
    %v1384 = vadd.f32 %v1368, %v1376
    %v1385 = vadd.f32 %v1369, %v1377
    %v1386 = vadd.f32 %v1370, %v1378
    %v1387 = vadd.f32 %v1371, %v1379
    %v1388 = vadd.f32 %v1372, %v1380
    %v1389 = vmul.f32 %v1125, %v933
    %v1390 = vmul.f32 %v1126, %v934
    %v1391 = vmul.f32 %v1127, %v935
    %v1392 = vmul.f32 %v1128, %v936
    %v1393 = vmul.f32 %v1129, %v937
    %v1394 = vmul.f32 %v1130, %v938
    %v1395 = vmul.f32 %v1131, %v939
    %v1396 = vmul.f32 %v1132, %v940
    %v1397 = vmul.f32 %v1213, %v957
    %v1398 = vmul.f32 %v1214, %v958
    %v1399 = vmul.f32 %v1215, %v959
    %v1400 = vmul.f32 %v1216, %v960
    %v1401 = vmul.f32 %v1217, %v961
    %v1402 = vmul.f32 %v1218, %v962
    %v1403 = vmul.f32 %v1219, %v963
    %v1404 = vmul.f32 %v1220, %v964
    %v1405 = vadd.f32 %v1389, %v1397
    %v1406 = vadd.f32 %v1390, %v1398
    %v1407 = vadd.f32 %v1391, %v1399
    %v1408 = vadd.f32 %v1392, %v1400
    %v1409 = vadd.f32 %v1393, %v1401
    %v1410 = vadd.f32 %v1394, %v1402
    %v1411 = vadd.f32 %v1395, %v1403
    %v1412 = vadd.f32 %v1396, %v1404
    %v1413 = vmul.f32 %v1133, %v957
    %v1414 = vmul.f32 %v1134, %v958
    %v1415 = vmul.f32 %v1135, %v959
    %v1416 = vmul.f32 %v1136, %v960
    %v1417 = vmul.f32 %v1137, %v961
    %v1418 = vmul.f32 %v1138, %v962
    %v1419 = vmul.f32 %v1139, %v963
    %v1420 = vmul.f32 %v1140, %v964
    %v1421 = vmul.f32 %v1221, %v981
    %v1422 = vmul.f32 %v1222, %v982
    %v1423 = vmul.f32 %v1223, %v983
    %v1424 = vmul.f32 %v1224, %v984
    %v1425 = vmul.f32 %v1225, %v985
    %v1426 = vmul.f32 %v1226, %v986
    %v1427 = vmul.f32 %v1227, %v987
    %v1428 = vmul.f32 %v1228, %v988
    %v1429 = vadd.f32 %v1413, %v1421
    %v1430 = vadd.f32 %v1414, %v1422
    %v1431 = vadd.f32 %v1415, %v1423
    %v1432 = vadd.f32 %v1416, %v1424
    %v1433 = vadd.f32 %v1417, %v1425
    %v1434 = vadd.f32 %v1418, %v1426
    %v1435 = vadd.f32 %v1419, %v1427
    %v1436 = vadd.f32 %v1420, %v1428
    %v1437 = vmul.f32 %v1141, %v981
    %v1438 = vmul.f32 %v1142, %v982
    %v1439 = vmul.f32 %v1143, %v983
    %v1440 = vmul.f32 %v1144, %v984
    %v1441 = vmul.f32 %v1145, %v985
    %v1442 = vmul.f32 %v1146, %v986
    %v1443 = vmul.f32 %v1147, %v987
    %v1444 = vmul.f32 %v1148, %v988
    %v1445 = vmul.f32 %v1229, %v1005
    %v1446 = vmul.f32 %v1230, %v1006
    %v1447 = vmul.f32 %v1231, %v1007
    %v1448 = vmul.f32 %v1232, %v1008
    %v1449 = vmul.f32 %v1233, %v1009
    %v1450 = vmul.f32 %v1234, %v1010
    %v1451 = vmul.f32 %v1235, %v1011
    %v1452 = vmul.f32 %v1236, %v1012
    %v1453 = vadd.f32 %v1437, %v1445
    %v1454 = vadd.f32 %v1438, %v1446
    %v1455 = vadd.f32 %v1439, %v1447
    %v1456 = vadd.f32 %v1440, %v1448
    %v1457 = vadd.f32 %v1441, %v1449
    %v1458 = vadd.f32 %v1442, %v1450
    %v1459 = vadd.f32 %v1443, %v1451
    %v1460 = vadd.f32 %v1444, %v1452
    %v1461 = vmul.f32 %v1149, %v1005
    %v1462 = vmul.f32 %v1150, %v1006
    %v1463 = vmul.f32 %v1151, %v1007
    %v1464 = vmul.f32 %v1152, %v1008
    %v1465 = vmul.f32 %v1153, %v1009
    %v1466 = vmul.f32 %v1154, %v1010
    %v1467 = vmul.f32 %v1155, %v1011
    %v1468 = vmul.f32 %v1156, %v1012
    %v1469 = vmul.f32 %v1237, %v1029
    %v1470 = vmul.f32 %v1238, %v1030
    %v1471 = vmul.f32 %v1239, %v1031
    %v1472 = vmul.f32 %v1240, %v1032
    %v1473 = vmul.f32 %v1241, %v1033
    %v1474 = vmul.f32 %v1242, %v1034
    %v1475 = vmul.f32 %v1243, %v1035
    %v1476 = vmul.f32 %v1244, %v1036
    %v1477 = vadd.f32 %v1461, %v1469
    %v1478 = vadd.f32 %v1462, %v1470
    %v1479 = vadd.f32 %v1463, %v1471
    %v1480 = vadd.f32 %v1464, %v1472
    %v1481 = vadd.f32 %v1465, %v1473
    %v1482 = vadd.f32 %v1466, %v1474
    %v1483 = vadd.f32 %v1467, %v1475
    %v1484 = vadd.f32 %v1468, %v1476
    %v1485 = vmul.f32 %v141, 250.0
    %v1486 = vmul.f32 %v142, 250.0
    %v1487 = vmul.f32 %v143, 250.0
    %v1488 = vmul.f32 %v144, 250.0
    %v1489 = vmul.f32 %v145, 250.0
    %v1490 = vmul.f32 %v146, 250.0
    %v1491 = vmul.f32 %v147, 250.0
    %v1492 = vmul.f32 %v148, 250.0
    %v1493 = vadd.f32 %v1485, 644.95734
    %v1494 = vadd.f32 %v1486, 644.95734
    %v1495 = vadd.f32 %v1487, 644.95734
    %v1496 = vadd.f32 %v1488, 644.95734
    %v1497 = vadd.f32 %v1489, 644.95734
    %v1498 = vadd.f32 %v1490, 644.95734
    %v1499 = vadd.f32 %v1491, 644.95734
    %v1500 = vadd.f32 %v1492, 644.95734
    %v1501 = vmul.f32 %v141, 0.6156382
    %v1502 = vmul.f32 %v142, 0.6156382
    %v1503 = vmul.f32 %v143, 0.6156382
    %v1504 = vmul.f32 %v144, 0.6156382
    %v1505 = vmul.f32 %v145, 0.6156382
    %v1506 = vmul.f32 %v146, 0.6156382
    %v1507 = vmul.f32 %v147, 0.6156382
    %v1508 = vmul.f32 %v148, 0.6156382
    %v1509 = vadd.f32 %v1501, 1.5874206
    %v1510 = vadd.f32 %v1502, 1.5874206
    %v1511 = vadd.f32 %v1503, 1.5874206
    %v1512 = vadd.f32 %v1504, 1.5874206
    %v1513 = vadd.f32 %v1505, 1.5874206
    %v1514 = vadd.f32 %v1506, 1.5874206
    %v1515 = vadd.f32 %v1507, 1.5874206
    %v1516 = vadd.f32 %v1508, 1.5874206
    %v1517 = vmul.f32 %v141, 0.4648969
    %v1518 = vmul.f32 %v142, 0.4648969
    %v1519 = vmul.f32 %v143, 0.4648969
    %v1520 = vmul.f32 %v144, 0.4648969
    %v1521 = vmul.f32 %v145, 0.4648969
    %v1522 = vmul.f32 %v146, 0.4648969
    %v1523 = vmul.f32 %v147, 0.4648969
    %v1524 = vmul.f32 %v148, 0.4648969
    %v1525 = vadd.f32 %v1517, 1.1981149
    %v1526 = vadd.f32 %v1518, 1.1981149
    %v1527 = vadd.f32 %v1519, 1.1981149
    %v1528 = vadd.f32 %v1520, 1.1981149
    %v1529 = vadd.f32 %v1521, 1.1981149
    %v1530 = vadd.f32 %v1522, 1.1981149
    %v1531 = vadd.f32 %v1523, 1.1981149
    %v1532 = vadd.f32 %v1524, 1.1981149
    %v1533 = vmul.f32 %v141, 0.38822448
    %v1534 = vmul.f32 %v142, 0.38822448
    %v1535 = vmul.f32 %v143, 0.38822448
    %v1536 = vmul.f32 %v144, 0.38822448
    %v1537 = vmul.f32 %v145, 0.38822448
    %v1538 = vmul.f32 %v146, 0.38822448
    %v1539 = vmul.f32 %v147, 0.38822448
    %v1540 = vmul.f32 %v148, 0.38822448
    %v1541 = vadd.f32 %v1533, 1.0
    %v1542 = vadd.f32 %v1534, 1.0
    %v1543 = vadd.f32 %v1535, 1.0
    %v1544 = vadd.f32 %v1536, 1.0
    %v1545 = vadd.f32 %v1537, 1.0
    %v1546 = vadd.f32 %v1538, 1.0
    %v1547 = vadd.f32 %v1539, 1.0
    %v1548 = vadd.f32 %v1540, 1.0
    %v1549 = vmul.f32 %v141, 0.72447324
    %v1550 = vmul.f32 %v142, 0.72447324
    %v1551 = vmul.f32 %v143, 0.72447324
    %v1552 = vmul.f32 %v144, 0.72447324
    %v1553 = vmul.f32 %v145, 0.72447324
    %v1554 = vmul.f32 %v146, 0.72447324
    %v1555 = vmul.f32 %v147, 0.72447324
    %v1556 = vmul.f32 %v148, 0.72447324
    %v1557 = vadd.f32 %v1549, 0.6912672
    %v1558 = vadd.f32 %v1550, 0.6912672
    %v1559 = vadd.f32 %v1551, 0.6912672
    %v1560 = vadd.f32 %v1552, 0.6912672
    %v1561 = vadd.f32 %v1553, 0.6912672
    %v1562 = vadd.f32 %v1554, 0.6912672
    %v1563 = vadd.f32 %v1555, 0.6912672
    %v1564 = vadd.f32 %v1556, 0.6912672
    %v1565 = vadd.f32 %v1549, 0.3087328
    %v1566 = vadd.f32 %v1550, 0.3087328
    %v1567 = vadd.f32 %v1551, 0.3087328
    %v1568 = vadd.f32 %v1552, 0.3087328
    %v1569 = vadd.f32 %v1553, 0.3087328
    %v1570 = vadd.f32 %v1554, 0.3087328
    %v1571 = vadd.f32 %v1555, 0.3087328
    %v1572 = vadd.f32 %v1556, 0.3087328
    %v1573 = vadd.f32 %v1533, 5.4019814e-17
    %v1574 = vadd.f32 %v1534, 5.4019814e-17
    %v1575 = vadd.f32 %v1535, 5.4019814e-17
    %v1576 = vadd.f32 %v1536, 5.4019814e-17
    %v1577 = vadd.f32 %v1537, 5.4019814e-17
    %v1578 = vadd.f32 %v1538, 5.4019814e-17
    %v1579 = vadd.f32 %v1539, 5.4019814e-17
    %v1580 = vadd.f32 %v1540, 5.4019814e-17
    %v1581 = vadd.f32 %v1517, -0.19811489
    %v1582 = vadd.f32 %v1518, -0.19811489
    %v1583 = vadd.f32 %v1519, -0.19811489
    %v1584 = vadd.f32 %v1520, -0.19811489
    %v1585 = vadd.f32 %v1521, -0.19811489
    %v1586 = vadd.f32 %v1522, -0.19811489
    %v1587 = vadd.f32 %v1523, -0.19811489
    %v1588 = vadd.f32 %v1524, -0.19811489
    %v1589 = vadd.f32 %v1501, -0.5874206
    %v1590 = vadd.f32 %v1502, -0.5874206
    %v1591 = vadd.f32 %v1503, -0.5874206
    %v1592 = vadd.f32 %v1504, -0.5874206
    %v1593 = vadd.f32 %v1505, -0.5874206
    %v1594 = vadd.f32 %v1506, -0.5874206
    %v1595 = vadd.f32 %v1507, -0.5874206
    %v1596 = vadd.f32 %v1508, -0.5874206
    %v1597 = vadd.f32 %v1485, -643.95734
    %v1598 = vadd.f32 %v1486, -643.95734
    %v1599 = vadd.f32 %v1487, -643.95734
    %v1600 = vadd.f32 %v1488, -643.95734
    %v1601 = vadd.f32 %v1489, -643.95734
    %v1602 = vadd.f32 %v1490, -643.95734
    %v1603 = vadd.f32 %v1491, -643.95734
    %v1604 = vadd.f32 %v1492, -643.95734
    %v1605 = vsub.f32 1.0, %v1509
    %v1606 = vsub.f32 1.0, %v1510
    %v1607 = vsub.f32 1.0, %v1511
    %v1608 = vsub.f32 1.0, %v1512
    %v1609 = vsub.f32 1.0, %v1513
    %v1610 = vsub.f32 1.0, %v1514
    %v1611 = vsub.f32 1.0, %v1515
    %v1612 = vsub.f32 1.0, %v1516
    %v1613 = vsub.f32 1.0, %v1525
    %v1614 = vsub.f32 1.0, %v1526
    %v1615 = vsub.f32 1.0, %v1527
    %v1616 = vsub.f32 1.0, %v1528
    %v1617 = vsub.f32 1.0, %v1529
    %v1618 = vsub.f32 1.0, %v1530
    %v1619 = vsub.f32 1.0, %v1531
    %v1620 = vsub.f32 1.0, %v1532
    %v1621 = vsub.f32 1.0, %v1541
    %v1622 = vsub.f32 1.0, %v1542
    %v1623 = vsub.f32 1.0, %v1543
    %v1624 = vsub.f32 1.0, %v1544
    %v1625 = vsub.f32 1.0, %v1545
    %v1626 = vsub.f32 1.0, %v1546
    %v1627 = vsub.f32 1.0, %v1547
    %v1628 = vsub.f32 1.0, %v1548
    %v1629 = vsub.f32 1.0, %v1557
    %v1630 = vsub.f32 1.0, %v1558
    %v1631 = vsub.f32 1.0, %v1559
    %v1632 = vsub.f32 1.0, %v1560
    %v1633 = vsub.f32 1.0, %v1561
    %v1634 = vsub.f32 1.0, %v1562
    %v1635 = vsub.f32 1.0, %v1563
    %v1636 = vsub.f32 1.0, %v1564
    %v1637 = vsub.f32 1.0, %v1565
    %v1638 = vsub.f32 1.0, %v1566
    %v1639 = vsub.f32 1.0, %v1567
    %v1640 = vsub.f32 1.0, %v1568
    %v1641 = vsub.f32 1.0, %v1569
    %v1642 = vsub.f32 1.0, %v1570
    %v1643 = vsub.f32 1.0, %v1571
    %v1644 = vsub.f32 1.0, %v1572
    %v1645 = vsub.f32 1.0, %v1573
    %v1646 = vsub.f32 1.0, %v1574
    %v1647 = vsub.f32 1.0, %v1575
    %v1648 = vsub.f32 1.0, %v1576
    %v1649 = vsub.f32 1.0, %v1577
    %v1650 = vsub.f32 1.0, %v1578
    %v1651 = vsub.f32 1.0, %v1579
    %v1652 = vsub.f32 1.0, %v1580
    %v1653 = vsub.f32 1.0, %v1581
    %v1654 = vsub.f32 1.0, %v1582
    %v1655 = vsub.f32 1.0, %v1583
    %v1656 = vsub.f32 1.0, %v1584
    %v1657 = vsub.f32 1.0, %v1585
    %v1658 = vsub.f32 1.0, %v1586
    %v1659 = vsub.f32 1.0, %v1587
    %v1660 = vsub.f32 1.0, %v1588
    %v1661 = vsub.f32 1.0, %v1589
    %v1662 = vsub.f32 1.0, %v1590
    %v1663 = vsub.f32 1.0, %v1591
    %v1664 = vsub.f32 1.0, %v1592
    %v1665 = vsub.f32 1.0, %v1593
    %v1666 = vsub.f32 1.0, %v1594
    %v1667 = vsub.f32 1.0, %v1595
    %v1668 = vsub.f32 1.0, %v1596
    %v1669 = vsub.f32 1.0, %v1597
    %v1670 = vsub.f32 1.0, %v1598
    %v1671 = vsub.f32 1.0, %v1599
    %v1672 = vsub.f32 1.0, %v1600
    %v1673 = vsub.f32 1.0, %v1601
    %v1674 = vsub.f32 1.0, %v1602
    %v1675 = vsub.f32 1.0, %v1603
    %v1676 = vsub.f32 1.0, %v1604
    %v1677 = vmul.f32 %v1493, %v1261
    %v1678 = vmul.f32 %v1494, %v1262
    %v1679 = vmul.f32 %v1495, %v1263
    %v1680 = vmul.f32 %v1496, %v1264
    %v1681 = vmul.f32 %v1497, %v1265
    %v1682 = vmul.f32 %v1498, %v1266
    %v1683 = vmul.f32 %v1499, %v1267
    %v1684 = vmul.f32 %v1500, %v1268
    %v1685 = vmul.f32 %v1605, %v1285
    %v1686 = vmul.f32 %v1606, %v1286
    %v1687 = vmul.f32 %v1607, %v1287
    %v1688 = vmul.f32 %v1608, %v1288
    %v1689 = vmul.f32 %v1609, %v1289
    %v1690 = vmul.f32 %v1610, %v1290
    %v1691 = vmul.f32 %v1611, %v1291
    %v1692 = vmul.f32 %v1612, %v1292
    %v1693 = vadd.f32 %v1677, %v1685
    %v1694 = vadd.f32 %v1678, %v1686
    %v1695 = vadd.f32 %v1679, %v1687
    %v1696 = vadd.f32 %v1680, %v1688
    %v1697 = vadd.f32 %v1681, %v1689
    %v1698 = vadd.f32 %v1682, %v1690
    %v1699 = vadd.f32 %v1683, %v1691
    %v1700 = vadd.f32 %v1684, %v1692
    %v1701 = vmul.f32 %v1509, %v1285
    %v1702 = vmul.f32 %v1510, %v1286
    %v1703 = vmul.f32 %v1511, %v1287
    %v1704 = vmul.f32 %v1512, %v1288
    %v1705 = vmul.f32 %v1513, %v1289
    %v1706 = vmul.f32 %v1514, %v1290
    %v1707 = vmul.f32 %v1515, %v1291
    %v1708 = vmul.f32 %v1516, %v1292
    %v1709 = vmul.f32 %v1613, %v1309
    %v1710 = vmul.f32 %v1614, %v1310
    %v1711 = vmul.f32 %v1615, %v1311
    %v1712 = vmul.f32 %v1616, %v1312
    %v1713 = vmul.f32 %v1617, %v1313
    %v1714 = vmul.f32 %v1618, %v1314
    %v1715 = vmul.f32 %v1619, %v1315
    %v1716 = vmul.f32 %v1620, %v1316
    %v1717 = vadd.f32 %v1701, %v1709
    %v1718 = vadd.f32 %v1702, %v1710
    %v1719 = vadd.f32 %v1703, %v1711
    %v1720 = vadd.f32 %v1704, %v1712
    %v1721 = vadd.f32 %v1705, %v1713
    %v1722 = vadd.f32 %v1706, %v1714
    %v1723 = vadd.f32 %v1707, %v1715
    %v1724 = vadd.f32 %v1708, %v1716
    %v1725 = vmul.f32 %v1525, %v1309
    %v1726 = vmul.f32 %v1526, %v1310
    %v1727 = vmul.f32 %v1527, %v1311
    %v1728 = vmul.f32 %v1528, %v1312
    %v1729 = vmul.f32 %v1529, %v1313
    %v1730 = vmul.f32 %v1530, %v1314
    %v1731 = vmul.f32 %v1531, %v1315
    %v1732 = vmul.f32 %v1532, %v1316
    %v1733 = vmul.f32 %v1621, %v1333
    %v1734 = vmul.f32 %v1622, %v1334
    %v1735 = vmul.f32 %v1623, %v1335
    %v1736 = vmul.f32 %v1624, %v1336
    %v1737 = vmul.f32 %v1625, %v1337
    %v1738 = vmul.f32 %v1626, %v1338
    %v1739 = vmul.f32 %v1627, %v1339
    %v1740 = vmul.f32 %v1628, %v1340
    %v1741 = vadd.f32 %v1725, %v1733
    %v1742 = vadd.f32 %v1726, %v1734
    %v1743 = vadd.f32 %v1727, %v1735
    %v1744 = vadd.f32 %v1728, %v1736
    %v1745 = vadd.f32 %v1729, %v1737
    %v1746 = vadd.f32 %v1730, %v1738
    %v1747 = vadd.f32 %v1731, %v1739
    %v1748 = vadd.f32 %v1732, %v1740
    %v1749 = vmul.f32 %v1541, %v1333
    %v1750 = vmul.f32 %v1542, %v1334
    %v1751 = vmul.f32 %v1543, %v1335
    %v1752 = vmul.f32 %v1544, %v1336
    %v1753 = vmul.f32 %v1545, %v1337
    %v1754 = vmul.f32 %v1546, %v1338
    %v1755 = vmul.f32 %v1547, %v1339
    %v1756 = vmul.f32 %v1548, %v1340
    %v1757 = vmul.f32 %v1629, %v1357
    %v1758 = vmul.f32 %v1630, %v1358
    %v1759 = vmul.f32 %v1631, %v1359
    %v1760 = vmul.f32 %v1632, %v1360
    %v1761 = vmul.f32 %v1633, %v1361
    %v1762 = vmul.f32 %v1634, %v1362
    %v1763 = vmul.f32 %v1635, %v1363
    %v1764 = vmul.f32 %v1636, %v1364
    %v1765 = vadd.f32 %v1749, %v1757
    %v1766 = vadd.f32 %v1750, %v1758
    %v1767 = vadd.f32 %v1751, %v1759
    %v1768 = vadd.f32 %v1752, %v1760
    %v1769 = vadd.f32 %v1753, %v1761
    %v1770 = vadd.f32 %v1754, %v1762
    %v1771 = vadd.f32 %v1755, %v1763
    %v1772 = vadd.f32 %v1756, %v1764
    %v1773 = vmul.f32 %v1557, %v1357
    %v1774 = vmul.f32 %v1558, %v1358
    %v1775 = vmul.f32 %v1559, %v1359
    %v1776 = vmul.f32 %v1560, %v1360
    %v1777 = vmul.f32 %v1561, %v1361
    %v1778 = vmul.f32 %v1562, %v1362
    %v1779 = vmul.f32 %v1563, %v1363
    %v1780 = vmul.f32 %v1564, %v1364
    %v1781 = vmul.f32 %v1637, %v1381
    %v1782 = vmul.f32 %v1638, %v1382
    %v1783 = vmul.f32 %v1639, %v1383
    %v1784 = vmul.f32 %v1640, %v1384
    %v1785 = vmul.f32 %v1641, %v1385
    %v1786 = vmul.f32 %v1642, %v1386
    %v1787 = vmul.f32 %v1643, %v1387
    %v1788 = vmul.f32 %v1644, %v1388
    %v1789 = vadd.f32 %v1773, %v1781
    %v1790 = vadd.f32 %v1774, %v1782
    %v1791 = vadd.f32 %v1775, %v1783
    %v1792 = vadd.f32 %v1776, %v1784
    %v1793 = vadd.f32 %v1777, %v1785
    %v1794 = vadd.f32 %v1778, %v1786
    %v1795 = vadd.f32 %v1779, %v1787
    %v1796 = vadd.f32 %v1780, %v1788
    %v1797 = vmul.f32 %v1565, %v1381
    %v1798 = vmul.f32 %v1566, %v1382
    %v1799 = vmul.f32 %v1567, %v1383
    %v1800 = vmul.f32 %v1568, %v1384
    %v1801 = vmul.f32 %v1569, %v1385
    %v1802 = vmul.f32 %v1570, %v1386
    %v1803 = vmul.f32 %v1571, %v1387
    %v1804 = vmul.f32 %v1572, %v1388
    %v1805 = vmul.f32 %v1645, %v1405
    %v1806 = vmul.f32 %v1646, %v1406
    %v1807 = vmul.f32 %v1647, %v1407
    %v1808 = vmul.f32 %v1648, %v1408
    %v1809 = vmul.f32 %v1649, %v1409
    %v1810 = vmul.f32 %v1650, %v1410
    %v1811 = vmul.f32 %v1651, %v1411
    %v1812 = vmul.f32 %v1652, %v1412
    %v1813 = vadd.f32 %v1797, %v1805
    %v1814 = vadd.f32 %v1798, %v1806
    %v1815 = vadd.f32 %v1799, %v1807
    %v1816 = vadd.f32 %v1800, %v1808
    %v1817 = vadd.f32 %v1801, %v1809
    %v1818 = vadd.f32 %v1802, %v1810
    %v1819 = vadd.f32 %v1803, %v1811
    %v1820 = vadd.f32 %v1804, %v1812
    %v1821 = vmul.f32 %v1573, %v1405
    %v1822 = vmul.f32 %v1574, %v1406
    %v1823 = vmul.f32 %v1575, %v1407
    %v1824 = vmul.f32 %v1576, %v1408
    %v1825 = vmul.f32 %v1577, %v1409
    %v1826 = vmul.f32 %v1578, %v1410
    %v1827 = vmul.f32 %v1579, %v1411
    %v1828 = vmul.f32 %v1580, %v1412
    %v1829 = vmul.f32 %v1653, %v1429
    %v1830 = vmul.f32 %v1654, %v1430
    %v1831 = vmul.f32 %v1655, %v1431
    %v1832 = vmul.f32 %v1656, %v1432
    %v1833 = vmul.f32 %v1657, %v1433
    %v1834 = vmul.f32 %v1658, %v1434
    %v1835 = vmul.f32 %v1659, %v1435
    %v1836 = vmul.f32 %v1660, %v1436
    %v1837 = vadd.f32 %v1821, %v1829
    %v1838 = vadd.f32 %v1822, %v1830
    %v1839 = vadd.f32 %v1823, %v1831
    %v1840 = vadd.f32 %v1824, %v1832
    %v1841 = vadd.f32 %v1825, %v1833
    %v1842 = vadd.f32 %v1826, %v1834
    %v1843 = vadd.f32 %v1827, %v1835
    %v1844 = vadd.f32 %v1828, %v1836
    %v1845 = vmul.f32 %v1581, %v1429
    %v1846 = vmul.f32 %v1582, %v1430
    %v1847 = vmul.f32 %v1583, %v1431
    %v1848 = vmul.f32 %v1584, %v1432
    %v1849 = vmul.f32 %v1585, %v1433
    %v1850 = vmul.f32 %v1586, %v1434
    %v1851 = vmul.f32 %v1587, %v1435
    %v1852 = vmul.f32 %v1588, %v1436
    %v1853 = vmul.f32 %v1661, %v1453
    %v1854 = vmul.f32 %v1662, %v1454
    %v1855 = vmul.f32 %v1663, %v1455
    %v1856 = vmul.f32 %v1664, %v1456
    %v1857 = vmul.f32 %v1665, %v1457
    %v1858 = vmul.f32 %v1666, %v1458
    %v1859 = vmul.f32 %v1667, %v1459
    %v1860 = vmul.f32 %v1668, %v1460
    %v1861 = vadd.f32 %v1845, %v1853
    %v1862 = vadd.f32 %v1846, %v1854
    %v1863 = vadd.f32 %v1847, %v1855
    %v1864 = vadd.f32 %v1848, %v1856
    %v1865 = vadd.f32 %v1849, %v1857
    %v1866 = vadd.f32 %v1850, %v1858
    %v1867 = vadd.f32 %v1851, %v1859
    %v1868 = vadd.f32 %v1852, %v1860
    %v1869 = vmul.f32 %v1589, %v1453
    %v1870 = vmul.f32 %v1590, %v1454
    %v1871 = vmul.f32 %v1591, %v1455
    %v1872 = vmul.f32 %v1592, %v1456
    %v1873 = vmul.f32 %v1593, %v1457
    %v1874 = vmul.f32 %v1594, %v1458
    %v1875 = vmul.f32 %v1595, %v1459
    %v1876 = vmul.f32 %v1596, %v1460
    %v1877 = vmul.f32 %v1669, %v1477
    %v1878 = vmul.f32 %v1670, %v1478
    %v1879 = vmul.f32 %v1671, %v1479
    %v1880 = vmul.f32 %v1672, %v1480
    %v1881 = vmul.f32 %v1673, %v1481
    %v1882 = vmul.f32 %v1674, %v1482
    %v1883 = vmul.f32 %v1675, %v1483
    %v1884 = vmul.f32 %v1676, %v1484
    %v1885 = vadd.f32 %v1869, %v1877
    %v1886 = vadd.f32 %v1870, %v1878
    %v1887 = vadd.f32 %v1871, %v1879
    %v1888 = vadd.f32 %v1872, %v1880
    %v1889 = vadd.f32 %v1873, %v1881
    %v1890 = vadd.f32 %v1874, %v1882
    %v1891 = vadd.f32 %v1875, %v1883
    %v1892 = vadd.f32 %v1876, %v1884
    %v1893 = vsub.f32 -2.5758293, %v141
    %v1894 = vsub.f32 -2.5758293, %v142
    %v1895 = vsub.f32 -2.5758293, %v143
    %v1896 = vsub.f32 -2.5758293, %v144
    %v1897 = vsub.f32 -2.5758293, %v145
    %v1898 = vsub.f32 -2.5758293, %v146
    %v1899 = vsub.f32 -2.5758293, %v147
    %v1900 = vsub.f32 -2.5758293, %v148
    %v1901 = vmax.f32 %v1893, 0.0
    %v1902 = vmax.f32 %v1894, 0.0
    %v1903 = vmax.f32 %v1895, 0.0
    %v1904 = vmax.f32 %v1896, 0.0
    %v1905 = vmax.f32 %v1897, 0.0
    %v1906 = vmax.f32 %v1898, 0.0
    %v1907 = vmax.f32 %v1899, 0.0
    %v1908 = vmax.f32 %v1900, 0.0
    %v1909 = vsub.f32 %v141, 2.5758293
    %v1910 = vsub.f32 %v142, 2.5758293
    %v1911 = vsub.f32 %v143, 2.5758293
    %v1912 = vsub.f32 %v144, 2.5758293
    %v1913 = vsub.f32 %v145, 2.5758293
    %v1914 = vsub.f32 %v146, 2.5758293
    %v1915 = vsub.f32 %v147, 2.5758293
    %v1916 = vsub.f32 %v148, 2.5758293
    %v1917 = vmax.f32 %v1909, 0.0
    %v1918 = vmax.f32 %v1910, 0.0
    %v1919 = vmax.f32 %v1911, 0.0
    %v1920 = vmax.f32 %v1912, 0.0
    %v1921 = vmax.f32 %v1913, 0.0
    %v1922 = vmax.f32 %v1914, 0.0
    %v1923 = vmax.f32 %v1915, 0.0
    %v1924 = vmax.f32 %v1916, 0.0
    %v1925 = vld [vmem:[#allocation2] sm:$0xff]
    %v1926 = vld [vmem:[#allocation2 + $0x8] sm:$0xff]
    %v1927 = vld [vmem:[#allocation2 + $0x10] sm:$0xff]
    %v1928 = vld [vmem:[#allocation2 + $0x18] sm:$0xff]
    %v1929 = vld [vmem:[#allocation2 + $0x20] sm:$0xff]
    %v1930 = vld [vmem:[#allocation2 + $0x28] sm:$0xff]
    %v1931 = vld [vmem:[%s4] sm:$0xff]
    %v1932 = vld [vmem:[%s4 + $0x8] sm:$0xff]
    %1934 = vset.pattern.permute.xlu0 0
    %1935 = vperm.xlu0 %1934, %v1931
    %v1936 = vpop.permute.xlu0 %1935
    %1939 = vset.pattern.permute.xlu0 0
    %1940 = vperm.xlu0 %1939, %v1932
    %v1941 = vpop.permute.xlu0 %1940
    %1943 = vmatpush.msra.mxu0 %v1747
    %1944 = vmatpush.msra.mxu0 %v1745
    %1945 = vmatpush.msra.mxu0 %v1743
    %1946 = vmatpush.msra.mxu0 %v1741
    %1947 = vmatpush.msra.mxu0 %v1723
    %1948 = vmatpush.msra.mxu0 %v1721
    %1949 = vmatpush.msra.mxu0 %v1719
    %1950 = vmatpush.msra.mxu0 %v1717
    %1951 = vmatpush.msra.mxu0 %v1699
    %1952 = vmatpush.msra.mxu0 %v1697
    %1953 = vmatpush.msra.mxu0 %v1695
    %1954 = vmatpush.msra.mxu0 %v1693
    %1955 = vmatpush.msra.mxu0 %v83
    %1956 = vmatpush.msra.mxu0 %v81
    %1957 = vmatpush.msra.mxu0 %v79
    %1958 = vmatpush.msra.mxu0 %v77
    %1959 = vmatmul.f32.gmra.mxu0 %v1925
    %v1960 = vpop.f32.mrf.mxu0
    %v1961 = vadd.f32 %v1936, %v1960
    %1962 = vmatmul.f32.gmra.mxu0 %v1928
    %v1963 = vpop.f32.mrf.mxu0
    %v1964 = vadd.f32 %v1941, %v1963
    %1965 = vdwg.mxu0
    %1966 = vmatpush.msra.mxu0 %v1843
    %1967 = vmatpush.msra.mxu0 %v1841
    %1968 = vmatpush.msra.mxu0 %v1839
    %1969 = vmatpush.msra.mxu0 %v1837
    %1970 = vmatpush.msra.mxu0 %v1819
    %1971 = vmatpush.msra.mxu0 %v1817
    %1972 = vmatpush.msra.mxu0 %v1815
    %1973 = vmatpush.msra.mxu0 %v1813
    %1974 = vmatpush.msra.mxu0 %v1795
    %1975 = vmatpush.msra.mxu0 %v1793
    %1976 = vmatpush.msra.mxu0 %v1791
    %1977 = vmatpush.msra.mxu0 %v1789
    %1978 = vmatpush.msra.mxu0 %v1771
    %1979 = vmatpush.msra.mxu0 %v1769
    %1980 = vmatpush.msra.mxu0 %v1767
    %1981 = vmatpush.msra.mxu0 %v1765
    %1982 = vmatmul.f32.gmra.mxu0 %v1926
    %v1983 = vpop.f32.mrf.mxu0
    %v1984 = vadd.f32 %v1961, %v1983
    %1985 = vmatmul.f32.gmra.mxu0 %v1929
    %v1986 = vpop.f32.mrf.mxu0
    %v1987 = vadd.f32 %v1964, %v1986
    %1988 = vdwg.mxu0
    %1989 = vmatpush.msra.mxu0 %v1923
    %1990 = vmatpush.msra.mxu0 %v1921
    %1991 = vmatpush.msra.mxu0 %v1919
    %1992 = vmatpush.msra.mxu0 %v1917
    %1993 = vmatpush.msra.mxu0 %v1907
    %1994 = vmatpush.msra.mxu0 %v1905
    %1995 = vmatpush.msra.mxu0 %v1903
    %1996 = vmatpush.msra.mxu0 %v1901
    %1997 = vmatpush.msra.mxu0 %v1891
    %1998 = vmatpush.msra.mxu0 %v1889
    %1999 = vmatpush.msra.mxu0 %v1887
    %2000 = vmatpush.msra.mxu0 %v1885
    %2001 = vmatpush.msra.mxu0 %v1867
    %2002 = vmatpush.msra.mxu0 %v1865
    %2003 = vmatpush.msra.mxu0 %v1863
    %2004 = vmatpush.msra.mxu0 %v1861
    %2005 = vmatmul.f32.gmra.mxu0 %v1927
    %v2006 = vpop.f32.mrf.mxu0
    %v2007 = vadd.f32 %v1984, %v2006
    %2008 = vmatmul.f32.gmra.mxu0 %v1930
    %v2009 = vpop.f32.mrf.mxu0
    %v2010 = vadd.f32 %v1987, %v2009
    %2011 = vdwg.mxu0
    %2012 = vmatpush.msra.mxu0 %v1748
    %2013 = vmatpush.msra.mxu0 %v1746
    %2014 = vmatpush.msra.mxu0 %v1744
    %2015 = vmatpush.msra.mxu0 %v1742
    %2016 = vmatpush.msra.mxu0 %v1724
    %2017 = vmatpush.msra.mxu0 %v1722
    %2018 = vmatpush.msra.mxu0 %v1720
    %2019 = vmatpush.msra.mxu0 %v1718
    %2020 = vmatpush.msra.mxu0 %v1700
    %2021 = vmatpush.msra.mxu0 %v1698
    %2022 = vmatpush.msra.mxu0 %v1696
    %2023 = vmatpush.msra.mxu0 %v1694
    %2024 = vmatpush.msra.mxu0 %v84
    %2025 = vmatpush.msra.mxu0 %v82
    %2026 = vmatpush.msra.mxu0 %v80
    %2027 = vmatpush.msra.mxu0 %v78
    %2028 = vmatmul.f32.gmra.mxu0 %v1925
    %v2029 = vpop.f32.mrf.mxu0
    %v2030 = vadd.f32 %v1936, %v2029
    %2031 = vmatmul.f32.gmra.mxu0 %v1928
    %v2032 = vpop.f32.mrf.mxu0
    %v2033 = vadd.f32 %v1941, %v2032
    %2034 = vdwg.mxu0
    %2035 = vmatpush.msra.mxu0 %v1844
    %2036 = vmatpush.msra.mxu0 %v1842
    %2037 = vmatpush.msra.mxu0 %v1840
    %2038 = vmatpush.msra.mxu0 %v1838
    %2039 = vmatpush.msra.mxu0 %v1820
    %2040 = vmatpush.msra.mxu0 %v1818
    %2041 = vmatpush.msra.mxu0 %v1816
    %2042 = vmatpush.msra.mxu0 %v1814
    %2043 = vmatpush.msra.mxu0 %v1796
    %2044 = vmatpush.msra.mxu0 %v1794
    %2045 = vmatpush.msra.mxu0 %v1792
    %2046 = vmatpush.msra.mxu0 %v1790
    %2047 = vmatpush.msra.mxu0 %v1772
    %2048 = vmatpush.msra.mxu0 %v1770
    %2049 = vmatpush.msra.mxu0 %v1768
    %2050 = vmatpush.msra.mxu0 %v1766
    %2051 = vmatmul.f32.gmra.mxu0 %v1926
    %v2052 = vpop.f32.mrf.mxu0
    %v2053 = vadd.f32 %v2030, %v2052
    %2054 = vmatmul.f32.gmra.mxu0 %v1929
    %v2055 = vpop.f32.mrf.mxu0
    %v2056 = vadd.f32 %v2033, %v2055
    %2057 = vdwg.mxu0
    %2058 = vmatpush.msra.mxu0 %v1924
    %2059 = vmatpush.msra.mxu0 %v1922
    %2060 = vmatpush.msra.mxu0 %v1920
    %2061 = vmatpush.msra.mxu0 %v1918
    %2062 = vmatpush.msra.mxu0 %v1908
    %2063 = vmatpush.msra.mxu0 %v1906
    %2064 = vmatpush.msra.mxu0 %v1904
    %2065 = vmatpush.msra.mxu0 %v1902
    %2066 = vmatpush.msra.mxu0 %v1892
    %2067 = vmatpush.msra.mxu0 %v1890
    %2068 = vmatpush.msra.mxu0 %v1888
    %2069 = vmatpush.msra.mxu0 %v1886
    %2070 = vmatpush.msra.mxu0 %v1868
    %2071 = vmatpush.msra.mxu0 %v1866
    %2072 = vmatpush.msra.mxu0 %v1864
    %2073 = vmatpush.msra.mxu0 %v1862
    %2074 = vmatmul.f32.gmra.mxu0 %v1927
    %v2075 = vpop.f32.mrf.mxu0
    %v2076 = vadd.f32 %v2053, %v2075
    %2077 = vmatmul.f32.gmra.mxu0 %v1930
    %v2078 = vpop.f32.mrf.mxu0
    %v2079 = vadd.f32 %v2056, %v2078
    %2080 = vdwg.mxu0
    %2081 = vst [vmem:[#allocation5] sm:$0xff] %v2007
    %2082 = vst [vmem:[#allocation5 + $0x8] sm:$0xff] %v2076
    %2083 = vst [vmem:[#allocation5 + $0x10] sm:$0xff] %v2010
    %2084 = vst [vmem:[#allocation5 + $0x18] sm:$0xff] %v2079
    // Predicated region
    $region26: #{tpu_custom_call.1} parent=1 // pred_check
      _
    $region27: #{tpu_custom_call.1} parent=1 // pred_check_branch
      %2086 = sbr.rel (0) target = $region29
    $region28: #{tpu_custom_call.1} parent=1 // pred_region
      %2088 = vsyncadd [#allocation4], 0
      %s2089 = sshll.u32 [#allocation5], 4
      %s2090 = int_to_ptr.vmem [resolvable:$true] %s2089
      %s2091 = sshll.u32 %s5, 4
      %s2092 = int_to_ptr.hbm [resolvable:$true] %s2091
      %2097 = dma.vmem_to_hbm [thread:$0]  %s2090, 512, %s2092, [#allocation4], 256, 256, 16
    $region29: #{tpu_custom_call.1} parent=1 // pred_fallthru
      _
    // Predicated region
    $region30: #{tpu_custom_call.1} parent=1 // pred_check
      _
    $region31: #{tpu_custom_call.1} parent=1 // pred_check_branch
      %2099 = sbr.rel (0) target = $region33
    $region32: #{tpu_custom_call.1} parent=1 // pred_region
      %2101 = dma.done [#allocation4], 512
    $region33: #{tpu_custom_call.1} parent=1 // pred_fallthru
      _
    %2102 = vsyncpa [#allocation3], 1
    %2103 = vsyncpa [#allocation4], 1

</llo_original>
